<compile_context>
chip_gen: v5e
topology: v5e:2x2
jax: 0.10.0
libtpu: 0.0.40
codegen_flags: <defaults>
</compile_context>

<pallas_src>
import functools

import numpy as np
import jax
import jax.numpy as jnp
from jax.experimental import pallas as pl
from jax.experimental.pallas import tpu as pltpu


# ----------------------------------------------------------------------------
# helpers
# ----------------------------------------------------------------------------

def _round_up(x, m):
    return ((x + m - 1) // m) * m


# ----------------------------------------------------------------------------
# Kernel 1: per-point MLP  (points -> point features, streamed over row tiles)
# ----------------------------------------------------------------------------

def _point_mlp_kernel(x_ref, w1_ref, b1_ref, w2_ref, b2_ref, o_ref,
                      *, n_points, tile_rows):
    i = pl.program_id(0)
    x = x_ref[...].astype(jnp.float32)
    h = jnp.dot(x, w1_ref[...], preferred_element_type=jnp.float32) + b1_ref[...]
    h = jnp.maximum(h, 0.0)
    o = jnp.dot(h, w2_ref[...], preferred_element_type=jnp.float32) + b2_ref[...]
    # Zero rows past the true point count: padded/partial-block rows must be
    # exactly 0 so they can never contaminate the pooling reduction.
    row = i * tile_rows + jax.lax.broadcasted_iota(jnp.int32, o.shape, 0)
    o = jnp.where(row < n_points, o, 0.0)
    o_ref[...] = o.astype(o_ref.dtype)


def point_mlp(points, w1, b1, w2, b2, *, t_n, n_pad, out_dtype=jnp.bfloat16):
    n, d_in = points.shape
    c = w2.shape[1]
    kernel = functools.partial(_point_mlp_kernel, n_points=n, tile_rows=t_n)
    return pl.pallas_call(
        kernel,
        out_shape=jax.ShapeDtypeStruct((n_pad, c), out_dtype),
        grid=(n_pad // t_n,),
        in_specs=[
            pl.BlockSpec((t_n, d_in), lambda i: (i, 0)),
            pl.BlockSpec(w1.shape, lambda i: (0, 0)),
            pl.BlockSpec(b1.shape, lambda i: (0, 0)),
            pl.BlockSpec(w2.shape, lambda i: (0, 0)),
            pl.BlockSpec(b2.shape, lambda i: (0, 0)),
        ],
        out_specs=pl.BlockSpec((t_n, c), lambda i: (i, 0)),
        compiler_params=pltpu.CompilerParams(dimension_semantics=("parallel",)),
    )(points, w1, b1, w2, b2)


# ----------------------------------------------------------------------------
# Kernel 2: fused voxel-side chain
#   on-the-fly membership mask -> sum+count pooling accumulation (N reduction)
#   -> mean normalize -> encoder (mean head) -> decoder MLP -> sdf
# ----------------------------------------------------------------------------

def _fused_voxel_kernel(sv_ref, pt_ref, feat_ref,
                        ew_ref, eb_ref, dw1_ref, db1_ref, dw2_ref, db2_ref,
                        sdf_ref, acc_ref, cnt_ref):
    k = pl.program_id(1)

    @pl.when(k == 0)
    def _init():
        acc_ref[...] = jnp.zeros_like(acc_ref)
        cnt_ref[...] = jnp.zeros_like(cnt_ref)

    # Membership mask built in-register: (t_m, 1) == (1, t_n) -> (t_m, t_n).
    # pt_id padding rows carry a -1 sentinel (never matches a voxel id >= 0).
    eq = sv_ref[...] == pt_ref[...]
    mask = eq.astype(feat_ref.dtype)                      # exact 0/1, bf16 MXU operand
    acc_ref[...] += jnp.dot(mask, feat_ref[...],
                            preferred_element_type=jnp.float32)
    cnt_ref[...] += jnp.sum(eq.astype(jnp.float32), axis=1, keepdims=True)

    @pl.when(k == pl.num_programs(1) - 1)
    def _finalize():
        # scatter-mean: empty voxels get 0 (count clamped to 1)
        pooled = acc_ref[...] / jnp.maximum(cnt_ref[...], 1.0)
        # encoder: only the mean half of the posterior head (latent = mode)
        mean = jnp.dot(pooled, ew_ref[...],
                       preferred_element_type=jnp.float32) + eb_ref[...]
        # decoder MLP -> per-voxel sdf
        h = jnp.dot(mean, dw1_ref[...],
                    preferred_element_type=jnp.float32) + db1_ref[...]
        h = jnp.maximum(h, 0.0)
        sdf = jnp.dot(h, dw2_ref[...],
                      preferred_element_type=jnp.float32) + db2_ref[...]
        sdf_ref[...] = sdf.astype(sdf_ref.dtype)


def fused_voxel_chain(sv_id2d, pt_id2d, point_feat,
                      ew, eb, dw1, db1, dw2, db2, *, t_m, t_n):
    m = sv_id2d.shape[0]
    n_pad = pt_id2d.shape[1]
    c = point_feat.shape[1]
    grid = (pl.cdiv(m, t_m), n_pad // t_n)
    return pl.pallas_call(
        _fused_voxel_kernel,
        out_shape=jax.ShapeDtypeStruct((m, 1), jnp.float32),
        grid=grid,
        in_specs=[
            pl.BlockSpec((t_m, 1), lambda i, k: (i, 0)),     # voxel ids
            pl.BlockSpec((1, t_n), lambda i, k: (0, k)),     # point ids
            pl.BlockSpec((t_n, c), lambda i, k: (k, 0)),     # point features
            pl.BlockSpec(ew.shape, lambda i, k: (0, 0)),
            pl.BlockSpec(eb.shape, lambda i, k: (0, 0)),
            pl.BlockSpec(dw1.shape, lambda i, k: (0, 0)),
            pl.BlockSpec(db1.shape, lambda i, k: (0, 0)),
            pl.BlockSpec(dw2.shape, lambda i, k: (0, 0)),
            pl.BlockSpec(db2.shape, lambda i, k: (0, 0)),
        ],
        out_specs=pl.BlockSpec((t_m, 1), lambda i, k: (i, 0)),
        scratch_shapes=[
            pltpu.VMEM((t_m, c), jnp.float32),   # pooled feature accumulator
            pltpu.VMEM((t_m, 1), jnp.float32),   # point-count accumulator
        ],
        compiler_params=pltpu.CompilerParams(
            dimension_semantics=("parallel", "arbitrary")),
    )(sv_id2d, pt_id2d, point_feat, ew, eb, dw1, db1, dw2, db2)


# ----------------------------------------------------------------------------
# Model (synthetic, deterministic parameters)
# ----------------------------------------------------------------------------

class TripoSFVAEInferenceJax:
    def __init__(self, resolution=16, use_normals=True, pruning=False,
                 pc_feat_dim=32, hidden=32, latent_dim=16, seed=0):
        self.resolution = resolution
        self.use_normals = use_normals
        self.pruning = pruning
        self.latent_dim = latent_dim

        d_pt = 6 if use_normals else 3
        key = jax.random.PRNGKey(seed)
        ks = jax.random.split(key, 10)

        def init_lin(kw, kb, fan_in, fan_out):
            lim = 1.0 / np.sqrt(fan_in)
            w = jax.random.uniform(kw, (fan_in, fan_out), jnp.float32, -lim, lim)
            b = jax.random.uniform(kb, (1, fan_out), jnp.float32, -lim, lim)
            return w, b

        # local_pc_encoder: per-point MLP d_pt -> hidden -> pc_feat_dim
        self.pe_w1, self.pe_b1 = init_lin(ks[0], ks[1], d_pt, hidden)
        self.pe_w2, self.pe_b2 = init_lin(ks[2], ks[3], hidden, pc_feat_dim)
        # encoder: pc_feat_dim -> 2 * latent_dim  (mean, logvar)
        self.enc_w, self.enc_b = init_lin(ks[4], ks[5], pc_feat_dim, 2 * latent_dim)
        # decoder: latent_dim -> hidden -> 1 (per-voxel SDF)
        self.dec_w1, self.dec_b1 = init_lin(ks[6], ks[7], latent_dim, hidden)
        self.dec_w2, self.dec_b2 = init_lin(ks[8], ks[9], hidden, 1)

        self._forward = jax.jit(self._forward_impl)

    # --- voxel id computation (cheap XLA elementwise work) -------------------
    def _voxel_ids(self, xyz, bbox_size=(-0.5, 0.5)):
        res = self.resolution
        bmin, bmax = bbox_size
        vox = jnp.clip(
            jnp.floor((xyz - bmin) / (bmax - bmin) * res), 0, res - 1
        ).astype(jnp.int32)
        return (vox[:, 0] * res + vox[:, 1]) * res + vox[:, 2]

    # --- fused forward --------------------------------------------------------
    def _forward_impl(self, points_sample, sparse_voxel_coords):
        n = points_sample.shape[0]
        m = sparse_voxel_coords.shape[0]
        res = self.resolution

        # tiling (static shapes under jit)
        t_n = min(1024, _round_up(n, 128))     # point-row tile (MLP rows / pool lanes)
        n_pad = _round_up(n, t_n)
        t_m = min(256, _round_up(m, 8))        # voxel-row tile

        # --- local_pc_encoder part 1: per-point MLP (Pallas kernel 1) ---
        point_feat = point_mlp(points_sample, self.pe_w1, self.pe_b1,
                               self.pe_w2, self.pe_b2,
                               t_n=t_n, n_pad=n_pad, out_dtype=jnp.bfloat16)

        # voxel ids for points and for the listed sparse voxels
        pt_id = self._voxel_ids(points_sample[:, :3])
        pt_id_pad = jnp.full((n_pad,), -1, jnp.int32).at[:n].set(pt_id)
        pt_id2d = pt_id_pad.reshape(1, n_pad)

        sv = sparse_voxel_coords[:, 1:4].astype(jnp.int32)   # drop batch column
        sv_id2d = ((sv[:, 0] * res + sv[:, 1]) * res + sv[:, 2]).reshape(m, 1)

        # only the mean half of the posterior head is needed (latent = mode)
        ew = self.enc_w[:, : self.latent_dim]
        eb = self.enc_b[:, : self.latent_dim]

        # --- pool + encoder + decoder fused (Pallas kernel 2) ---
        # TODO(synk): torch_scatter sparse scatter-mean has no direct Pallas
        # equivalent; it is expressed as an on-the-fly membership-mask matmul
        # accumulated over a reduction grid axis (never materialized in HBM).
        sdf = fused_voxel_chain(sv_id2d, pt_id2d, point_feat,
                                ew, eb, self.dec_w1, self.dec_b1,
                                self.dec_w2, self.dec_b2,
                                t_m=t_m, t_n=t_n)
        # pruning=False in the reference config -> keep every voxel.
        return sparse_voxel_coords, sdf

    def __call__(self, points_sample, sparse_voxel_coords):
        return self._forward(points_sample, sparse_voxel_coords)

    # --- pure-JAX reference (for correctness check) ---------------------------
    def reference_forward(self, points_sample, sparse_voxel_coords):
        res = self.resolution
        pt_id = self._voxel_ids(points_sample[:, :3])
        sv = sparse_voxel_coords[:, 1:4].astype(jnp.int32)
        sv_id = (sv[:, 0] * res + sv[:, 1]) * res + sv[:, 2]
        h = jnp.maximum(points_sample @ self.pe_w1 + self.pe_b1, 0.0)
        feat = h @ self.pe_w2 + self.pe_b2
        mask = (sv_id[:, None] == pt_id[None, :]).astype(jnp.float32)
        summed = mask @ feat
        counts = jnp.maximum(mask.sum(axis=1, keepdims=True), 1.0)
        pooled = summed / counts
        mean = pooled @ self.enc_w[:, : self.latent_dim] + self.enc_b[:, : self.latent_dim]
        hd = jnp.maximum(mean @ self.dec_w1 + self.dec_b1, 0.0)
        return hd @ self.dec_w2 + self.dec_b2


# ----------------------------------------------------------------------------
# Main
# ----------------------------------------------------------------------------

if __name__ == "__main__":
    RES = 16
    N_POINTS = 256
    N_VOXELS = 64

    key = jax.random.PRNGKey(0)
    k_xyz, k_nrm = jax.random.split(key)

    xyz = jax.random.uniform(k_xyz, (N_POINTS, 3), jnp.float32, -0.5, 0.5)
    nrm = jax.random.normal(k_nrm, (N_POINTS, 3), jnp.float32)
    nrm = nrm / jnp.linalg.norm(nrm, axis=-1, keepdims=True)
    points_sample = jnp.concatenate([xyz, nrm], axis=-1)            # (N, 6)

    # Sparse voxel coords derived from the occupied cells of the point cloud.
    vox_np = np.clip(
        np.floor((np.asarray(xyz) + 0.5) * RES), 0, RES - 1
    ).astype(np.int32)
    uniq = np.unique(vox_np, axis=0)
    if uniq.shape[0] >= N_VOXELS:
        uniq = uniq[:N_VOXELS]
    else:
        reps = int(np.ceil(N_VOXELS / uniq.shape[0]))
        uniq = np.tile(uniq, (reps, 1))[:N_VOXELS]
    sparse_voxel_coords = jnp.asarray(
        np.concatenate([np.zeros((N_VOXELS, 1), np.int32), uniq], axis=1)
    )                                                               # (M, 4) b,x,y,z

    model = TripoSFVAEInferenceJax(resolution=RES, use_normals=True,
                                   pruning=False, seed=0)
    coords_out, sdf_out = model(points_sample, sparse_voxel_coords)
    jax.block_until_ready(sdf_out)

    # correctness check vs dense pure-JAX reference (bf16 feature tolerance)
    sdf_ref = model.reference_forward(points_sample, sparse_voxel_coords)
    np.testing.assert_allclose(np.asarray(sdf_out), np.asarray(sdf_ref),
                               atol=5e-2, rtol=5e-2)

    assert coords_out.shape == (N_VOXELS, 4)
    assert sdf_out.shape == (N_VOXELS, 1)
    assert bool(jnp.all(jnp.isfinite(sdf_out)))
    print("KERNEL_OK")
</pallas_src>

<mosaic_0001>
module attributes {stable_mosaic.version = 11 : i64} {
  func.func @_point_mlp_kernel(%arg0: i32, %arg1: memref<256x6xf32, #tpu.memory_space<vmem>>, %arg2: memref<6x32xf32, #tpu.memory_space<vmem>>, %arg3: memref<1x32xf32, #tpu.memory_space<vmem>>, %arg4: memref<32x32xf32, #tpu.memory_space<vmem>>, %arg5: memref<1x32xf32, #tpu.memory_space<vmem>>, %arg6: memref<256x32xbf16, #tpu.memory_space<vmem>>) attributes {dimension_semantics = [#tpu.dimension_semantics<parallel>], iteration_bounds = array<i64: 1>, scalar_prefetch = 0 : i64, scratch_operands = 0 : i64, tpu.core_type = #tpu.core_type<tc>, window_params = [{transform_indices = @transform_0, window_bounds = array<i64: 256, 6>}, {pipeline_mode = #tpu.pipeline_mode<synchronous>, transform_indices = @transform_1, window_bounds = array<i64: 6, 32>}, {pipeline_mode = #tpu.pipeline_mode<synchronous>, transform_indices = @transform_2, window_bounds = array<i64: 1, 32>}, {pipeline_mode = #tpu.pipeline_mode<synchronous>, transform_indices = @transform_3, window_bounds = array<i64: 32, 32>}, {pipeline_mode = #tpu.pipeline_mode<synchronous>, transform_indices = @transform_4, window_bounds = array<i64: 1, 32>}, {transform_indices = @transform_5, window_bounds = array<i64: 256, 32>}]} {
    %c0 = arith.constant 0 : index
    %c0_0 = arith.constant 0 : index
    %0 = vector.load %arg1[%c0, %c0_0] : memref<256x6xf32, #tpu.memory_space<vmem>>, vector<256x6xf32>
    %c0_1 = arith.constant 0 : index
    %c0_2 = arith.constant 0 : index
    %1 = vector.load %arg2[%c0_1, %c0_2] : memref<6x32xf32, #tpu.memory_space<vmem>>, vector<6x32xf32>
    %cst = arith.constant dense<0.000000e+00> : vector<256x32xf32>
    %2 = tpu.matmul %0, %1, %cst {dimension_numbers = #tpu.dot_dimension_numbers<[1], [0], [0], [1], [0, 0, 1, 1], [], []>} : vector<256x6xf32>, vector<6x32xf32>, vector<256x32xf32> -> vector<256x32xf32>
    %c0_3 = arith.constant 0 : index
    %c0_4 = arith.constant 0 : index
    %3 = vector.load %arg3[%c0_3, %c0_4] : memref<1x32xf32, #tpu.memory_space<vmem>>, vector<1x32xf32>
    %4 = vector.broadcast %3 : vector<1x32xf32> to vector<256x32xf32>
    %5 = arith.addf %2, %4 : vector<256x32xf32>
    %cst_5 = arith.constant 0.000000e+00 : f32
    %6 = vector.broadcast %cst_5 : f32 to vector<256x32xf32>
    %7 = arith.maximumf %5, %6 : vector<256x32xf32>
    %c0_6 = arith.constant 0 : index
    %c0_7 = arith.constant 0 : index
    %8 = vector.load %arg4[%c0_6, %c0_7] : memref<32x32xf32, #tpu.memory_space<vmem>>, vector<32x32xf32>
    %cst_8 = arith.constant dense<0.000000e+00> : vector<256x32xf32>
    %9 = tpu.matmul %7, %8, %cst_8 {dimension_numbers = #tpu.dot_dimension_numbers<[1], [0], [0], [1], [0, 0, 1, 1], [], []>} : vector<256x32xf32>, vector<32x32xf32>, vector<256x32xf32> -> vector<256x32xf32>
    %c0_9 = arith.constant 0 : index
    %c0_10 = arith.constant 0 : index
    %10 = vector.load %arg5[%c0_9, %c0_10] : memref<1x32xf32, #tpu.memory_space<vmem>>, vector<1x32xf32>
    %11 = vector.broadcast %10 : vector<1x32xf32> to vector<256x32xf32>
    %12 = arith.addf %9, %11 : vector<256x32xf32>
    %c256_i32 = arith.constant 256 : i32
    %13 = arith.muli %arg0, %c256_i32 : i32
    %14 = tpu.iota {dimensions = array<i32: 0>} : vector<256x32xi32>
    %15 = vector.broadcast %13 : i32 to vector<256x32xi32>
    %16 = arith.addi %15, %14 : vector<256x32xi32>
    %c256_i32_11 = arith.constant 256 : i32
    %17 = vector.broadcast %c256_i32_11 : i32 to vector<256x32xi32>
    %18 = arith.cmpi slt, %16, %17 : vector<256x32xi32>
    %cst_12 = arith.constant 0.000000e+00 : f32
    %19 = vector.broadcast %cst_12 : f32 to vector<256x32xf32>
    %20 = arith.select %18, %12, %19 : vector<256x32xi1>, vector<256x32xf32>
    %21 = arith.truncf %20 : vector<256x32xf32> to vector<256x32xbf16>
    %c0_13 = arith.constant 0 : index
    %c0_14 = arith.constant 0 : index
    %22 = vector.load %arg6[%c0_13, %c0_14] : memref<256x32xbf16, #tpu.memory_space<vmem>>, vector<256x32xbf16>
    tpu.vector_store %arg6[%c0_13, %c0_14], %21 {strides = array<i32>} : memref<256x32xbf16, #tpu.memory_space<vmem>>, vector<256x32xbf16>,
    return
  }
  func.func @transform_0(%arg0: i32) -> (i32, i32) {
    %c0_i32 = arith.constant 0 : i32
    %c0_i32_0 = arith.constant 0 : i32
    return %arg0, %c0_i32 : i32, i32
  }
  func.func @transform_1(%arg0: i32) -> (i32, i32) {
    %c0_i32 = arith.constant 0 : i32
    %c0_i32_0 = arith.constant 0 : i32
    %c0_i32_1 = arith.constant 0 : i32
    return %c0_i32, %c0_i32_0 : i32, i32
  }
  func.func @transform_2(%arg0: i32) -> (i32, i32) {
    %c0_i32 = arith.constant 0 : i32
    %c0_i32_0 = arith.constant 0 : i32
    %c0_i32_1 = arith.constant 0 : i32
    return %c0_i32, %c0_i32_0 : i32, i32
  }
  func.func @transform_3(%arg0: i32) -> (i32, i32) {
    %c0_i32 = arith.constant 0 : i32
    %c0_i32_0 = arith.constant 0 : i32
    %c0_i32_1 = arith.constant 0 : i32
    return %c0_i32, %c0_i32_0 : i32, i32
  }
  func.func @transform_4(%arg0: i32) -> (i32, i32) {
    %c0_i32 = arith.constant 0 : i32
    %c0_i32_0 = arith.constant 0 : i32
    %c0_i32_1 = arith.constant 0 : i32
    return %c0_i32, %c0_i32_0 : i32, i32
  }
  func.func @transform_5(%arg0: i32) -> (i32, i32) {
    %c0_i32 = arith.constant 0 : i32
    %c0_i32_0 = arith.constant 0 : i32
    return %arg0, %c0_i32 : i32, i32
  }
}

module attributes {stable_mosaic.version = 11 : i64} {
  func.func @_fused_voxel_kernel(%arg0: i32, %arg1: i32, %arg2: memref<64x1xi32, #tpu.memory_space<vmem>>, %arg3: memref<1x256xi32, #tpu.memory_space<vmem>>, %arg4: memref<256x32xbf16, #tpu.memory_space<vmem>>, %arg5: memref<32x16xf32, #tpu.memory_space<vmem>>, %arg6: memref<1x16xf32, #tpu.memory_space<vmem>>, %arg7: memref<16x32xf32, #tpu.memory_space<vmem>>, %arg8: memref<1x32xf32, #tpu.memory_space<vmem>>, %arg9: memref<32x1xf32, #tpu.memory_space<vmem>>, %arg10: memref<1x1xf32, #tpu.memory_space<vmem>>, %arg11: memref<64x1xf32, #tpu.memory_space<vmem>>, %arg12: memref<64x32xf32, #tpu.memory_space<vmem>>, %arg13: memref<64x1xf32, #tpu.memory_space<vmem>>) attributes {dimension_semantics = [#tpu.dimension_semantics<parallel>, #tpu.dimension_semantics<arbitrary>], iteration_bounds = array<i64: 1, 1>, scalar_prefetch = 0 : i64, scratch_operands = 2 : i64, tpu.core_type = #tpu.core_type<tc>, window_params = [{transform_indices = @transform_0, window_bounds = array<i64: 64, 1>}, {transform_indices = @transform_1, window_bounds = array<i64: 1, 256>}, {transform_indices = @transform_2, window_bounds = array<i64: 256, 32>}, {pipeline_mode = #tpu.pipeline_mode<synchronous>, transform_indices = @transform_3, window_bounds = array<i64: 32, 16>}, {pipeline_mode = #tpu.pipeline_mode<synchronous>, transform_indices = @transform_4, window_bounds = array<i64: 1, 16>}, {pipeline_mode = #tpu.pipeline_mode<synchronous>, transform_indices = @transform_5, window_bounds = array<i64: 16, 32>}, {pipeline_mode = #tpu.pipeline_mode<synchronous>, transform_indices = @transform_6, window_bounds = array<i64: 1, 32>}, {pipeline_mode = #tpu.pipeline_mode<synchronous>, transform_indices = @transform_7, window_bounds = array<i64: 32, 1>}, {pipeline_mode = #tpu.pipeline_mode<synchronous>, transform_indices = @transform_8, window_bounds = array<i64: 1, 1>}, {transform_indices = @transform_9, window_bounds = array<i64: 64, 1>}]} {
    %c0_i32 = arith.constant 0 : i32
    %0 = arith.cmpi eq, %arg1, %c0_i32 : i32
    %1 = arith.extui %0 : i1 to i32
    %c0_i32_0 = arith.constant 0 : i32
    %2 = arith.cmpi ne, %1, %c0_i32_0 : i32
    scf.if %2 {
      %cst_17 = arith.constant 0.000000e+00 : f32
      %26 = vector.broadcast %cst_17 : f32 to vector<64x32xf32>
      %c0_18 = arith.constant 0 : index
      %c0_19 = arith.constant 0 : index
      %27 = vector.load %arg12[%c0_18, %c0_19] : memref<64x32xf32, #tpu.memory_space<vmem>>, vector<64x32xf32>
      tpu.vector_store %arg12[%c0_18, %c0_19], %26 {strides = array<i32>} : memref<64x32xf32, #tpu.memory_space<vmem>>, vector<64x32xf32>,
      %cst_20 = arith.constant 0.000000e+00 : f32
      %28 = vector.broadcast %cst_20 : f32 to vector<64x1xf32>
      %c0_21 = arith.constant 0 : index
      %c0_22 = arith.constant 0 : index
      %29 = vector.load %arg13[%c0_21, %c0_22] : memref<64x1xf32, #tpu.memory_space<vmem>>, vector<64x1xf32>
      tpu.vector_store %arg13[%c0_21, %c0_22], %28 {strides = array<i32>} : memref<64x1xf32, #tpu.memory_space<vmem>>, vector<64x1xf32>,
    } else {
    }
    %c0 = arith.constant 0 : index
    %c0_1 = arith.constant 0 : index
    %3 = vector.load %arg2[%c0, %c0_1] : memref<64x1xi32, #tpu.memory_space<vmem>>, vector<64x1xi32>
    %c0_2 = arith.constant 0 : index
    %c0_3 = arith.constant 0 : index
    %4 = vector.load %arg3[%c0_2, %c0_3] : memref<1x256xi32, #tpu.memory_space<vmem>>, vector<1x256xi32>
    %5 = vector.broadcast %3 : vector<64x1xi32> to vector<64x256xi32>
    %6 = vector.broadcast %4 : vector<1x256xi32> to vector<64x256xi32>
    %7 = arith.cmpi eq, %5, %6 : vector<64x256xi32>
    %8 = arith.extui %7 : vector<64x256xi1> to vector<64x256xi32>
    %9 = arith.sitofp %8 : vector<64x256xi32> to vector<64x256xf32>
    %10 = arith.truncf %9 : vector<64x256xf32> to vector<64x256xbf16>
    %c0_4 = arith.constant 0 : index
    %c0_5 = arith.constant 0 : index
    %11 = vector.load %arg12[%c0_4, %c0_5] : memref<64x32xf32, #tpu.memory_space<vmem>>, vector<64x32xf32>
    %c0_6 = arith.constant 0 : index
    %c0_7 = arith.constant 0 : index
    %12 = vector.load %arg4[%c0_6, %c0_7] : memref<256x32xbf16, #tpu.memory_space<vmem>>, vector<256x32xbf16>
    %cst = arith.constant dense<0.000000e+00> : vector<64x32xf32>
    %13 = tpu.matmul %10, %12, %cst {dimension_numbers = #tpu.dot_dimension_numbers<[1], [0], [0], [1], [0, 0, 1, 1], [], []>} : vector<64x256xbf16>, vector<256x32xbf16>, vector<64x32xf32> -> vector<64x32xf32>
    %14 = arith.addf %11, %13 : vector<64x32xf32>
    %c0_8 = arith.constant 0 : index
    %c0_9 = arith.constant 0 : index
    %15 = vector.load %arg12[%c0_8, %c0_9] : memref<64x32xf32, #tpu.memory_space<vmem>>, vector<64x32xf32>
    tpu.vector_store %arg12[%c0_8, %c0_9], %14 {strides = array<i32>} : memref<64x32xf32, #tpu.memory_space<vmem>>, vector<64x32xf32>,
    %c0_10 = arith.constant 0 : index
    %c0_11 = arith.constant 0 : index
    %16 = vector.load %arg13[%c0_10, %c0_11] : memref<64x1xf32, #tpu.memory_space<vmem>>, vector<64x1xf32>
    %17 = arith.extui %7 : vector<64x256xi1> to vector<64x256xi32>
    %18 = arith.sitofp %17 : vector<64x256xi32> to vector<64x256xf32>
    %cst_12 = arith.constant dense<0.000000e+00> : vector<64xf32>
    %19 = vector.multi_reduction <add>, %18, %cst_12 [1] : vector<64x256xf32> to vector<64xf32>
    %20 = vector.shape_cast %19 : vector<64xf32> to vector<64x1xf32>
    %21 = arith.addf %16, %20 : vector<64x1xf32>
    %c0_13 = arith.constant 0 : index
    %c0_14 = arith.constant 0 : index
    %22 = vector.load %arg13[%c0_13, %c0_14] : memref<64x1xf32, #tpu.memory_space<vmem>>, vector<64x1xf32>
    tpu.vector_store %arg13[%c0_13, %c0_14], %21 {strides = array<i32>} : memref<64x1xf32, #tpu.memory_space<vmem>>, vector<64x1xf32>,
    %c0_i32_15 = arith.constant 0 : i32
    %23 = arith.cmpi eq, %arg1, %c0_i32_15 : i32
    %24 = arith.extui %23 : i1 to i32
    %c0_i32_16 = arith.constant 0 : i32
    %25 = arith.cmpi ne, %24, %c0_i32_16 : i32
    scf.if %25 {
      %c0_17 = arith.constant 0 : index
      %c0_18 = arith.constant 0 : index
      %26 = vector.load %arg12[%c0_17, %c0_18] : memref<64x32xf32, #tpu.memory_space<vmem>>, vector<64x32xf32>
      %c0_19 = arith.constant 0 : index
      %c0_20 = arith.constant 0 : index
      %27 = vector.load %arg13[%c0_19, %c0_20] : memref<64x1xf32, #tpu.memory_space<vmem>>, vector<64x1xf32>
      %cst_21 = arith.constant 1.000000e+00 : f32
      %28 = vector.broadcast %cst_21 : f32 to vector<64x1xf32>
      %29 = arith.maximumf %27, %28 : vector<64x1xf32>
      %30 = vector.broadcast %29 : vector<64x1xf32> to vector<64x32xf32>
      %31 = arith.divf %26, %30 : vector<64x32xf32>
      %c0_22 = arith.constant 0 : index
      %c0_23 = arith.constant 0 : index
      %32 = vector.load %arg5[%c0_22, %c0_23] : memref<32x16xf32, #tpu.memory_space<vmem>>, vector<32x16xf32>
      %cst_24 = arith.constant dense<0.000000e+00> : vector<64x16xf32>
      %33 = tpu.matmul %31, %32, %cst_24 {dimension_numbers = #tpu.dot_dimension_numbers<[1], [0], [0], [1], [0, 0, 1, 1], [], []>} : vector<64x32xf32>, vector<32x16xf32>, vector<64x16xf32> -> vector<64x16xf32>
      %c0_25 = arith.constant 0 : index
      %c0_26 = arith.constant 0 : index
      %34 = vector.load %arg6[%c0_25, %c0_26] : memref<1x16xf32, #tpu.memory_space<vmem>>, vector<1x16xf32>
      %35 = vector.broadcast %34 : vector<1x16xf32> to vector<64x16xf32>
      %36 = arith.addf %33, %35 : vector<64x16xf32>
      %c0_27 = arith.constant 0 : index
      %c0_28 = arith.constant 0 : index
      %37 = vector.load %arg7[%c0_27, %c0_28] : memref<16x32xf32, #tpu.memory_space<vmem>>, vector<16x32xf32>
      %cst_29 = arith.constant dense<0.000000e+00> : vector<64x32xf32>
      %38 = tpu.matmul %36, %37, %cst_29 {dimension_numbers = #tpu.dot_dimension_numbers<[1], [0], [0], [1], [0, 0, 1, 1], [], []>} : vector<64x16xf32>, vector<16x32xf32>, vector<64x32xf32> -> vector<64x32xf32>
      %c0_30 = arith.constant 0 : index
      %c0_31 = arith.constant 0 : index
      %39 = vector.load %arg8[%c0_30, %c0_31] : memref<1x32xf32, #tpu.memory_space<vmem>>, vector<1x32xf32>
      %40 = vector.broadcast %39 : vector<1x32xf32> to vector<64x32xf32>
      %41 = arith.addf %38, %40 : vector<64x32xf32>
      %cst_32 = arith.constant 0.000000e+00 : f32
      %42 = vector.broadcast %cst_32 : f32 to vector<64x32xf32>
      %43 = arith.maximumf %41, %42 : vector<64x32xf32>
      %c0_33 = arith.constant 0 : index
      %c0_34 = arith.constant 0 : index
      %44 = vector.load %arg9[%c0_33, %c0_34] : memref<32x1xf32, #tpu.memory_space<vmem>>, vector<32x1xf32>
      %cst_35 = arith.constant dense<0.000000e+00> : vector<64x1xf32>
      %45 = tpu.matmul %43, %44, %cst_35 {dimension_numbers = #tpu.dot_dimension_numbers<[1], [0], [0], [1], [0, 0, 1, 1], [], []>} : vector<64x32xf32>, vector<32x1xf32>, vector<64x1xf32> -> vector<64x1xf32>
      %c0_36 = arith.constant 0 : index
      %c0_37 = arith.constant 0 : index
      %46 = vector.load %arg10[%c0_36, %c0_37] : memref<1x1xf32, #tpu.memory_space<vmem>>, vector<1x1xf32>
      %47 = vector.broadcast %46 : vector<1x1xf32> to vector<64x1xf32>
      %48 = arith.addf %45, %47 : vector<64x1xf32>
      %c0_38 = arith.constant 0 : index
      %c0_39 = arith.constant 0 : index
      %49 = vector.load %arg11[%c0_38, %c0_39] : memref<64x1xf32, #tpu.memory_space<vmem>>, vector<64x1xf32>
      tpu.vector_store %arg11[%c0_38, %c0_39], %48 {strides = array<i32>} : memref<64x1xf32, #tpu.memory_space<vmem>>, vector<64x1xf32>,
    } else {
    }
    return
  }
  func.func @transform_0(%arg0: i32, %arg1: i32) -> (i32, i32) {
    %c0_i32 = arith.constant 0 : i32
    %c0_i32_0 = arith.constant 0 : i32
    return %arg0, %c0_i32 : i32, i32
  }
  func.func @transform_1(%arg0: i32, %arg1: i32) -> (i32, i32) {
    %c0_i32 = arith.constant 0 : i32
    %c0_i32_0 = arith.constant 0 : i32
    return %c0_i32, %arg1 : i32, i32
  }
  func.func @transform_2(%arg0: i32, %arg1: i32) -> (i32, i32) {
    %c0_i32 = arith.constant 0 : i32
    %c0_i32_0 = arith.constant 0 : i32
    return %arg1, %c0_i32 : i32, i32
  }
  func.func @transform_3(%arg0: i32, %arg1: i32) -> (i32, i32) {
    %c0_i32 = arith.constant 0 : i32
    %c0_i32_0 = arith.constant 0 : i32
    %c0_i32_1 = arith.constant 0 : i32
    return %c0_i32, %c0_i32_0 : i32, i32
  }
  func.func @transform_4(%arg0: i32, %arg1: i32) -> (i32, i32) {
    %c0_i32 = arith.constant 0 : i32
    %c0_i32_0 = arith.constant 0 : i32
    %c0_i32_1 = arith.constant 0 : i32
    return %c0_i32, %c0_i32_0 : i32, i32
  }
  func.func @transform_5(%arg0: i32, %arg1: i32) -> (i32, i32) {
    %c0_i32 = arith.constant 0 : i32
    %c0_i32_0 = arith.constant 0 : i32
    %c0_i32_1 = arith.constant 0 : i32
    return %c0_i32, %c0_i32_0 : i32, i32
  }
  func.func @transform_6(%arg0: i32, %arg1: i32) -> (i32, i32) {
    %c0_i32 = arith.constant 0 : i32
    %c0_i32_0 = arith.constant 0 : i32
    %c0_i32_1 = arith.constant 0 : i32
    return %c0_i32, %c0_i32_0 : i32, i32
  }
  func.func @transform_7(%arg0: i32, %arg1: i32) -> (i32, i32) {
    %c0_i32 = arith.constant 0 : i32
    %c0_i32_0 = arith.constant 0 : i32
    %c0_i32_1 = arith.constant 0 : i32
    return %c0_i32, %c0_i32_0 : i32, i32
  }
  func.func @transform_8(%arg0: i32, %arg1: i32) -> (i32, i32) {
    %c0_i32 = arith.constant 0 : i32
    %c0_i32_0 = arith.constant 0 : i32
    %c0_i32_1 = arith.constant 0 : i32
    return %c0_i32, %c0_i32_0 : i32, i32
  }
  func.func @transform_9(%arg0: i32, %arg1: i32) -> (i32, i32) {
    %c0_i32 = arith.constant 0 : i32
    %c0_i32_0 = arith.constant 0 : i32
    return %arg0, %c0_i32 : i32, i32
  }
}

</mosaic_0001>

<llo_original>
// kernel: _forward_impl.2
$region0: #{_forward_impl.2}
  #allocation0 [shape = 'u32[]', space=smem, size = 0x4, offset = 0x4, fixed_abs, tag = 'smem constant byte address 0x4 - core index']
  #allocation1 [shape = 'u32[72,128]{1,0:T(1,128)}', space=vmem, size = 0x9000, scoped, tag = 'internal scratch']
  %s0 = inlined_call_operand.vmem [shape: f32[256,6], index: 0, kind: input, shape index: {}]
  %s1 = inlined_call_operand.vmem [shape: f32[6,32], index: 1, kind: input, shape index: {}]
  %s2 = inlined_call_operand.vmem [shape: f32[1,32], index: 2, kind: input, shape index: {}]
  %s3 = inlined_call_operand.vmem [shape: f32[32,32], index: 3, kind: input, shape index: {}]
  %s4 = inlined_call_operand.vmem [shape: f32[1,32], index: 4, kind: input, shape index: {}]
  %s5 = inlined_call_operand.vmem [shape: bf16[256,32], index: 5, kind: output, shape index: {}]
  %s6 = sld [smem:[#allocation0]]
  $region30: #{_forward_impl.2} parent=0
    _
  %s8 = ssub.s32 1, %s6
  %s9 = scalar_select 0, %s8, %s6
  // Predicated region
  $region2: #{_forward_impl.2} parent=0 // pred_check
    _
  $region3: #{_forward_impl.2} parent=0 // pred_check_branch
    %11 = sbr.rel (0) target = $region5
  $region4: #{_forward_impl.2} parent=0 // pred_region
    _
  $region5: #{_forward_impl.2} parent=0 // pred_fallthru
    _
  // Predicated region
  $region6: #{_forward_impl.2} parent=0 // pred_check
    _
  $region7: #{_forward_impl.2} parent=0 // pred_check_branch
    %13 = sbr.rel (0) target = $region9
  $region8: #{_forward_impl.2} parent=0 // pred_region
    _
  $region9: #{_forward_impl.2} parent=0 // pred_fallthru
    _
  // Predicated region
  $region10: #{_forward_impl.2} parent=0 // pred_check
    _
  $region11: #{_forward_impl.2} parent=0 // pred_check_branch
    %15 = sbr.rel (0) target = $region13
  $region12: #{_forward_impl.2} parent=0 // pred_region
    _
  $region13: #{_forward_impl.2} parent=0 // pred_fallthru
    _
  // Predicated region
  $region14: #{_forward_impl.2} parent=0 // pred_check
    _
  $region15: #{_forward_impl.2} parent=0 // pred_check_branch
    %17 = sbr.rel (0) target = $region17
  $region16: #{_forward_impl.2} parent=0 // pred_region
    _
  $region17: #{_forward_impl.2} parent=0 // pred_fallthru
    _
  // Predicated region
  $region18: #{_forward_impl.2} parent=0 // pred_check
    _
  $region19: #{_forward_impl.2} parent=0 // pred_check_branch
    %19 = sbr.rel (0) target = $region21
  $region20: #{_forward_impl.2} parent=0 // pred_region
    _
  $region21: #{_forward_impl.2} parent=0 // pred_fallthru
    _
  %v20 = vld [vmem:[%s0] sm:$0xff]
  %v21 = vld [vmem:[%s0 + $0x8] sm:$0xff]
  %v22 = vld [vmem:[%s0 + $0x10] sm:$0xff]
  %v23 = vld [vmem:[%s0 + $0x18] sm:$0xff]
  %v24 = vld [vmem:[%s0 + $0x20] sm:$0xff]
  %v25 = vld [vmem:[%s0 + $0x28] sm:$0xff]
  %v26 = vld [vmem:[%s0 + $0x30] sm:$0xff]
  %v27 = vld [vmem:[%s0 + $0x38] sm:$0xff]
  %v28 = vld [vmem:[%s0 + $0x40] sm:$0xff]
  %v29 = vld [vmem:[%s0 + $0x48] sm:$0xff]
  %v30 = vld [vmem:[%s0 + $0x50] sm:$0xff]
  %v31 = vld [vmem:[%s0 + $0x58] sm:$0xff]
  %v32 = vld [vmem:[%s0 + $0x60] sm:$0xff]
  %v33 = vld [vmem:[%s0 + $0x68] sm:$0xff]
  %v34 = vld [vmem:[%s0 + $0x70] sm:$0xff]
  %v35 = vld [vmem:[%s0 + $0x78] sm:$0xff]
  %v36 = vld [vmem:[%s0 + $0x80] sm:$0xff]
  %v37 = vld [vmem:[%s0 + $0x88] sm:$0xff]
  %v38 = vld [vmem:[%s0 + $0x90] sm:$0xff]
  %v39 = vld [vmem:[%s0 + $0x98] sm:$0xff]
  %v40 = vld [vmem:[%s0 + $0xa0] sm:$0xff]
  %v41 = vld [vmem:[%s0 + $0xa8] sm:$0xff]
  %v42 = vld [vmem:[%s0 + $0xb0] sm:$0xff]
  %v43 = vld [vmem:[%s0 + $0xb8] sm:$0xff]
  %v44 = vld [vmem:[%s0 + $0xc0] sm:$0xff]
  %v45 = vld [vmem:[%s0 + $0xc8] sm:$0xff]
  %v46 = vld [vmem:[%s0 + $0xd0] sm:$0xff]
  %v47 = vld [vmem:[%s0 + $0xd8] sm:$0xff]
  %v48 = vld [vmem:[%s0 + $0xe0] sm:$0xff]
  %v49 = vld [vmem:[%s0 + $0xe8] sm:$0xff]
  %v50 = vld [vmem:[%s0 + $0xf0] sm:$0xff]
  %v51 = vld [vmem:[%s0 + $0xf8] sm:$0xff]
  %v52 = vld [vmem:[%s1] sm:$0x3f]
  %v53 = vld [vmem:[%s2] sm:$0x1]
  %v55 = vperm.slane %v53, 0
  %vm57 = vcmask 48128
  %v59 = vsel %vm57, %v20, 0
  %v62 = vsel %vm57, %v21, 0
  %v65 = vsel %vm57, %v22, 0
  %v68 = vsel %vm57, %v23, 0
  %v71 = vsel %vm57, %v24, 0
  %v74 = vsel %vm57, %v25, 0
  %v77 = vsel %vm57, %v26, 0
  %v80 = vsel %vm57, %v27, 0
  %v83 = vsel %vm57, %v28, 0
  %v86 = vsel %vm57, %v29, 0
  %v89 = vsel %vm57, %v30, 0
  %v92 = vsel %vm57, %v31, 0
  %v95 = vsel %vm57, %v32, 0
  %v98 = vsel %vm57, %v33, 0
  %v101 = vsel %vm57, %v34, 0
  %v104 = vsel %vm57, %v35, 0
  %v107 = vsel %vm57, %v36, 0
  %v110 = vsel %vm57, %v37, 0
  %v113 = vsel %vm57, %v38, 0
  %v116 = vsel %vm57, %v39, 0
  %v119 = vsel %vm57, %v40, 0
  %v122 = vsel %vm57, %v41, 0
  %v125 = vsel %vm57, %v42, 0
  %v128 = vsel %vm57, %v43, 0
  %v131 = vsel %vm57, %v44, 0
  %v134 = vsel %vm57, %v45, 0
  %v137 = vsel %vm57, %v46, 0
  %v140 = vsel %vm57, %v47, 0
  %v143 = vsel %vm57, %v48, 0
  %v146 = vsel %vm57, %v49, 0
  %v149 = vsel %vm57, %v50, 0
  %v152 = vsel %vm57, %v51, 0
  %vm154 = vcmask 1045504
  %v156 = vsel %vm154, %v52, 0
  %158 = vmatpush.msra.mxu0 0.0
  %159 = vmatpush.msra.mxu0 0.0
  %160 = vmatpush.msra.mxu0 0.0
  %161 = vmatpush.msra.mxu0 0.0
  %162 = vmatpush.msra.mxu0 0.0
  %163 = vmatpush.msra.mxu0 0.0
  %164 = vmatpush.msra.mxu0 0.0
  %165 = vmatpush.msra.mxu0 0.0
  %166 = vmatpush.msra.mxu0 0.0
  %167 = vmatpush.msra.mxu0 0.0
  %168 = vmatpush.msra.mxu0 0.0
  %169 = vmatpush.msra.mxu0 0.0
  %170 = vmatpush.msra.mxu0 0.0
  %171 = vmatpush.msra.mxu0 0.0
  %172 = vmatpush.msra.mxu0 0.0
  %173 = vmatpush.msra.mxu0 %v156
  %174 = vmatmul.f32.gmra.mxu0 %v59
  %v175 = vpop.f32.mrf.mxu0
  %v176 = vadd.f32 %v55, %v175
  %177 = vmatmul.f32.gmra.mxu0 %v62
  %v178 = vpop.f32.mrf.mxu0
  %v179 = vadd.f32 %v55, %v178
  %180 = vmatmul.f32.gmra.mxu0 %v65
  %v181 = vpop.f32.mrf.mxu0
  %v182 = vadd.f32 %v55, %v181
  %183 = vmatmul.f32.gmra.mxu0 %v68
  %v184 = vpop.f32.mrf.mxu0
  %v185 = vadd.f32 %v55, %v184
  %186 = vmatmul.f32.gmra.mxu0 %v71
  %v187 = vpop.f32.mrf.mxu0
  %v188 = vadd.f32 %v55, %v187
  %189 = vmatmul.f32.gmra.mxu0 %v74
  %v190 = vpop.f32.mrf.mxu0
  %v191 = vadd.f32 %v55, %v190
  %192 = vmatmul.f32.gmra.mxu0 %v77
  %v193 = vpop.f32.mrf.mxu0
  %v194 = vadd.f32 %v55, %v193
  %195 = vmatmul.f32.gmra.mxu0 %v80
  %v196 = vpop.f32.mrf.mxu0
  %v197 = vadd.f32 %v55, %v196
  %198 = vmatmul.f32.gmra.mxu0 %v83
  %v199 = vpop.f32.mrf.mxu0
  %v200 = vadd.f32 %v55, %v199
  %201 = vmatmul.f32.gmra.mxu0 %v86
  %v202 = vpop.f32.mrf.mxu0
  %v203 = vadd.f32 %v55, %v202
  %204 = vmatmul.f32.gmra.mxu0 %v89
  %v205 = vpop.f32.mrf.mxu0
  %v206 = vadd.f32 %v55, %v205
  %207 = vmatmul.f32.gmra.mxu0 %v92
  %v208 = vpop.f32.mrf.mxu0
  %v209 = vadd.f32 %v55, %v208
  %210 = vmatmul.f32.gmra.mxu0 %v95
  %v211 = vpop.f32.mrf.mxu0
  %v212 = vadd.f32 %v55, %v211
  %213 = vmatmul.f32.gmra.mxu0 %v98
  %v214 = vpop.f32.mrf.mxu0
  %v215 = vadd.f32 %v55, %v214
  %216 = vmatmul.f32.gmra.mxu0 %v101
  %v217 = vpop.f32.mrf.mxu0
  %v218 = vadd.f32 %v55, %v217
  %219 = vmatmul.f32.gmra.mxu0 %v104
  %v220 = vpop.f32.mrf.mxu0
  %v221 = vadd.f32 %v55, %v220
  %222 = vmatmul.f32.gmra.mxu0 %v107
  %v223 = vpop.f32.mrf.mxu0
  %v224 = vadd.f32 %v55, %v223
  %225 = vmatmul.f32.gmra.mxu0 %v110
  %v226 = vpop.f32.mrf.mxu0
  %v227 = vadd.f32 %v55, %v226
  %228 = vmatmul.f32.gmra.mxu0 %v113
  %v229 = vpop.f32.mrf.mxu0
  %v230 = vadd.f32 %v55, %v229
  %231 = vmatmul.f32.gmra.mxu0 %v116
  %v232 = vpop.f32.mrf.mxu0
  %v233 = vadd.f32 %v55, %v232
  %234 = vmatmul.f32.gmra.mxu0 %v119
  %v235 = vpop.f32.mrf.mxu0
  %v236 = vadd.f32 %v55, %v235
  %237 = vmatmul.f32.gmra.mxu0 %v122
  %v238 = vpop.f32.mrf.mxu0
  %v239 = vadd.f32 %v55, %v238
  %240 = vmatmul.f32.gmra.mxu0 %v125
  %v241 = vpop.f32.mrf.mxu0
  %v242 = vadd.f32 %v55, %v241
  %243 = vmatmul.f32.gmra.mxu0 %v128
  %v244 = vpop.f32.mrf.mxu0
  %v245 = vadd.f32 %v55, %v244
  %246 = vmatmul.f32.gmra.mxu0 %v131
  %v247 = vpop.f32.mrf.mxu0
  %v248 = vadd.f32 %v55, %v247
  %249 = vmatmul.f32.gmra.mxu0 %v134
  %v250 = vpop.f32.mrf.mxu0
  %v251 = vadd.f32 %v55, %v250
  %252 = vmatmul.f32.gmra.mxu0 %v137
  %v253 = vpop.f32.mrf.mxu0
  %v254 = vadd.f32 %v55, %v253
  %255 = vmatmul.f32.gmra.mxu0 %v140
  %v256 = vpop.f32.mrf.mxu0
  %v257 = vadd.f32 %v55, %v256
  %258 = vmatmul.f32.gmra.mxu0 %v143
  %v259 = vpop.f32.mrf.mxu0
  %v260 = vadd.f32 %v55, %v259
  %261 = vmatmul.f32.gmra.mxu0 %v146
  %v262 = vpop.f32.mrf.mxu0
  %v263 = vadd.f32 %v55, %v262
  %264 = vmatmul.f32.gmra.mxu0 %v149
  %v265 = vpop.f32.mrf.mxu0
  %v266 = vadd.f32 %v55, %v265
  %267 = vmatmul.f32.gmra.mxu0 %v152
  %v268 = vpop.f32.mrf.mxu0
  %v269 = vadd.f32 %v55, %v268
  %270 = vdwg.mxu0
  %v271 = vmax.f32 %v176, 0.0
  %v272 = vmax.f32 %v179, 0.0
  %v273 = vmax.f32 %v182, 0.0
  %v274 = vmax.f32 %v185, 0.0
  %v275 = vmax.f32 %v188, 0.0
  %v276 = vmax.f32 %v191, 0.0
  %v277 = vmax.f32 %v194, 0.0
  %v278 = vmax.f32 %v197, 0.0
  %v279 = vmax.f32 %v200, 0.0
  %v280 = vmax.f32 %v203, 0.0
  %v281 = vmax.f32 %v206, 0.0
  %v282 = vmax.f32 %v209, 0.0
  %v283 = vmax.f32 %v212, 0.0
  %v284 = vmax.f32 %v215, 0.0
  %v285 = vmax.f32 %v218, 0.0
  %v286 = vmax.f32 %v221, 0.0
  %v287 = vmax.f32 %v224, 0.0
  %v288 = vmax.f32 %v227, 0.0
  %v289 = vmax.f32 %v230, 0.0
  %v290 = vmax.f32 %v233, 0.0
  %v291 = vmax.f32 %v236, 0.0
  %v292 = vmax.f32 %v239, 0.0
  %v293 = vmax.f32 %v242, 0.0
  %v294 = vmax.f32 %v245, 0.0
  %v295 = vmax.f32 %v248, 0.0
  %v296 = vmax.f32 %v251, 0.0
  %v297 = vmax.f32 %v254, 0.0
  %v298 = vmax.f32 %v257, 0.0
  %v299 = vmax.f32 %v260, 0.0
  %v300 = vmax.f32 %v263, 0.0
  %v301 = vmax.f32 %v266, 0.0
  %v302 = vmax.f32 %v269, 0.0
  %v303 = vld [vmem:[%s3] sm:$0xff]
  %v304 = vld [vmem:[%s3 + $0x8] sm:$0xff]
  %v305 = vld [vmem:[%s3 + $0x10] sm:$0xff]
  %v306 = vld [vmem:[%s3 + $0x18] sm:$0xff]
  %v307 = vld [vmem:[%s4] sm:$0x1]
  %v309 = vperm.slane %v307, 0
  %vm311 = vcmask 261120
  %v313 = vsel %vm311, %v271, 0
  %v316 = vsel %vm311, %v272, 0
  %v319 = vsel %vm311, %v273, 0
  %v322 = vsel %vm311, %v274, 0
  %v325 = vsel %vm311, %v275, 0
  %v328 = vsel %vm311, %v276, 0
  %v331 = vsel %vm311, %v277, 0
  %v334 = vsel %vm311, %v278, 0
  %v337 = vsel %vm311, %v279, 0
  %v340 = vsel %vm311, %v280, 0
  %v343 = vsel %vm311, %v281, 0
  %v346 = vsel %vm311, %v282, 0
  %v349 = vsel %vm311, %v283, 0
  %v352 = vsel %vm311, %v284, 0
  %v355 = vsel %vm311, %v285, 0
  %v358 = vsel %vm311, %v286, 0
  %v361 = vsel %vm311, %v287, 0
  %v364 = vsel %vm311, %v288, 0
  %v367 = vsel %vm311, %v289, 0
  %v370 = vsel %vm311, %v290, 0
  %v373 = vsel %vm311, %v291, 0
  %v376 = vsel %vm311, %v292, 0
  %v379 = vsel %vm311, %v293, 0
  %v382 = vsel %vm311, %v294, 0
  %v385 = vsel %vm311, %v295, 0
  %v388 = vsel %vm311, %v296, 0
  %v391 = vsel %vm311, %v297, 0
  %v394 = vsel %vm311, %v298, 0
  %v397 = vsel %vm311, %v299, 0
  %v400 = vsel %vm311, %v300, 0
  %v403 = vsel %vm311, %v301, 0
  %v406 = vsel %vm311, %v302, 0
  %408 = vmatpush.msra.mxu0 0.0
  %409 = vmatpush.msra.mxu0 0.0
  %410 = vmatpush.msra.mxu0 0.0
  %411 = vmatpush.msra.mxu0 0.0
  %412 = vmatpush.msra.mxu0 0.0
  %413 = vmatpush.msra.mxu0 0.0
  %414 = vmatpush.msra.mxu0 0.0
  %415 = vmatpush.msra.mxu0 0.0
  %416 = vmatpush.msra.mxu0 0.0
  %417 = vmatpush.msra.mxu0 0.0
  %418 = vmatpush.msra.mxu0 0.0
  %419 = vmatpush.msra.mxu0 0.0
  %420 = vmatpush.msra.mxu0 %v306
  %421 = vmatpush.msra.mxu0 %v305
  %422 = vmatpush.msra.mxu0 %v304
  %423 = vmatpush.msra.mxu0 %v303
  %424 = vmatmul.f32.gmra.mxu0 %v313
  %v425 = vpop.f32.mrf.mxu0
  %v426 = vadd.f32 %v309, %v425
  %427 = vmatmul.f32.gmra.mxu0 %v316
  %v428 = vpop.f32.mrf.mxu0
  %v429 = vadd.f32 %v309, %v428
  %430 = vmatmul.f32.gmra.mxu0 %v319
  %v431 = vpop.f32.mrf.mxu0
  %v432 = vadd.f32 %v309, %v431
  %433 = vmatmul.f32.gmra.mxu0 %v322
  %v434 = vpop.f32.mrf.mxu0
  %v435 = vadd.f32 %v309, %v434
  %436 = vmatmul.f32.gmra.mxu0 %v325
  %v437 = vpop.f32.mrf.mxu0
  %v438 = vadd.f32 %v309, %v437
  %439 = vmatmul.f32.gmra.mxu0 %v328
  %v440 = vpop.f32.mrf.mxu0
  %v441 = vadd.f32 %v309, %v440
  %442 = vmatmul.f32.gmra.mxu0 %v331
  %v443 = vpop.f32.mrf.mxu0
  %v444 = vadd.f32 %v309, %v443
  %445 = vmatmul.f32.gmra.mxu0 %v334
  %v446 = vpop.f32.mrf.mxu0
  %v447 = vadd.f32 %v309, %v446
  %448 = vmatmul.f32.gmra.mxu0 %v337
  %v449 = vpop.f32.mrf.mxu0
  %v450 = vadd.f32 %v309, %v449
  %451 = vmatmul.f32.gmra.mxu0 %v340
  %v452 = vpop.f32.mrf.mxu0
  %v453 = vadd.f32 %v309, %v452
  %454 = vmatmul.f32.gmra.mxu0 %v343
  %v455 = vpop.f32.mrf.mxu0
  %v456 = vadd.f32 %v309, %v455
  %457 = vmatmul.f32.gmra.mxu0 %v346
  %v458 = vpop.f32.mrf.mxu0
  %v459 = vadd.f32 %v309, %v458
  %460 = vmatmul.f32.gmra.mxu0 %v349
  %v461 = vpop.f32.mrf.mxu0
  %v462 = vadd.f32 %v309, %v461
  %463 = vmatmul.f32.gmra.mxu0 %v352
  %v464 = vpop.f32.mrf.mxu0
  %v465 = vadd.f32 %v309, %v464
  %466 = vmatmul.f32.gmra.mxu0 %v355
  %v467 = vpop.f32.mrf.mxu0
  %v468 = vadd.f32 %v309, %v467
  %469 = vmatmul.f32.gmra.mxu0 %v358
  %v470 = vpop.f32.mrf.mxu0
  %v471 = vadd.f32 %v309, %v470
  %472 = vmatmul.f32.gmra.mxu0 %v361
  %v473 = vpop.f32.mrf.mxu0
  %v474 = vadd.f32 %v309, %v473
  %475 = vmatmul.f32.gmra.mxu0 %v364
  %v476 = vpop.f32.mrf.mxu0
  %v477 = vadd.f32 %v309, %v476
  %478 = vmatmul.f32.gmra.mxu0 %v367
  %v479 = vpop.f32.mrf.mxu0
  %v480 = vadd.f32 %v309, %v479
  %481 = vmatmul.f32.gmra.mxu0 %v370
  %v482 = vpop.f32.mrf.mxu0
  %v483 = vadd.f32 %v309, %v482
  %484 = vmatmul.f32.gmra.mxu0 %v373
  %v485 = vpop.f32.mrf.mxu0
  %v486 = vadd.f32 %v309, %v485
  %487 = vmatmul.f32.gmra.mxu0 %v376
  %v488 = vpop.f32.mrf.mxu0
  %v489 = vadd.f32 %v309, %v488
  %490 = vmatmul.f32.gmra.mxu0 %v379
  %v491 = vpop.f32.mrf.mxu0
  %v492 = vadd.f32 %v309, %v491
  %493 = vmatmul.f32.gmra.mxu0 %v382
  %v494 = vpop.f32.mrf.mxu0
  %v495 = vadd.f32 %v309, %v494
  %496 = vmatmul.f32.gmra.mxu0 %v385
  %v497 = vpop.f32.mrf.mxu0
  %v498 = vadd.f32 %v309, %v497
  %499 = vmatmul.f32.gmra.mxu0 %v388
  %v500 = vpop.f32.mrf.mxu0
  %v501 = vadd.f32 %v309, %v500
  %502 = vmatmul.f32.gmra.mxu0 %v391
  %v503 = vpop.f32.mrf.mxu0
  %v504 = vadd.f32 %v309, %v503
  %505 = vmatmul.f32.gmra.mxu0 %v394
  %v506 = vpop.f32.mrf.mxu0
  %v507 = vadd.f32 %v309, %v506
  %508 = vmatmul.f32.gmra.mxu0 %v397
  %v509 = vpop.f32.mrf.mxu0
  %v510 = vadd.f32 %v309, %v509
  %511 = vmatmul.f32.gmra.mxu0 %v400
  %v512 = vpop.f32.mrf.mxu0
  %v513 = vadd.f32 %v309, %v512
  %514 = vmatmul.f32.gmra.mxu0 %v403
  %v515 = vpop.f32.mrf.mxu0
  %v516 = vadd.f32 %v309, %v515
  %517 = vmatmul.f32.gmra.mxu0 %v406
  %v518 = vpop.f32.mrf.mxu0
  %v519 = vadd.f32 %v309, %v518
  %520 = vdwg.mxu0
  %s521 = smul.u32 0, 256
  %v522 = vlaneseq
  %v523 = vshrl.u32 %v522, 7
  %v524 = vadd.s32 %v523, 8
  %v525 = vadd.s32 %v523, 16
  %v526 = vadd.s32 %v523, 24
  %v527 = vadd.s32 %v523, 32
  %v528 = vadd.s32 %v523, 40
  %v529 = vadd.s32 %v523, 48
  %v530 = vadd.s32 %v523, 56
  %v531 = vadd.s32 %v523, 64
  %v532 = vadd.s32 %v523, 72
  %v533 = vadd.s32 %v523, 80
  %v534 = vadd.s32 %v523, 88
  %v535 = vadd.s32 %v523, 96
  %v536 = vadd.s32 %v523, 104
  %v537 = vadd.s32 %v523, 112
  %v538 = vadd.s32 %v523, 120
  %v539 = vadd.s32 %v523, 128
  %v540 = vadd.s32 %v523, 136
  %v541 = vadd.s32 %v523, 144
  %v542 = vadd.s32 %v523, 152
  %v543 = vadd.s32 %v523, 160
  %v544 = vadd.s32 %v523, 168
  %v545 = vadd.s32 %v523, 176
  %v546 = vadd.s32 %v523, 184
  %v547 = vadd.s32 %v523, 192
  %v548 = vadd.s32 %v523, 200
  %v549 = vadd.s32 %v523, 208
  %v550 = vadd.s32 %v523, 216
  %v551 = vadd.s32 %v523, 224
  %v552 = vadd.s32 %v523, 232
  %v553 = vadd.s32 %v523, 240
  %v554 = vadd.s32 %v523, 248
  %v555 = vstv %s521
  %v556 = vadd.s32 %v555, %v523
  %v557 = vadd.s32 %v555, %v524
  %v558 = vadd.s32 %v555, %v525
  %v559 = vadd.s32 %v555, %v526
  %v560 = vadd.s32 %v555, %v527
  %v561 = vadd.s32 %v555, %v528
  %v562 = vadd.s32 %v555, %v529
  %v563 = vadd.s32 %v555, %v530
  %v564 = vadd.s32 %v555, %v531
  %v565 = vadd.s32 %v555, %v532
  %v566 = vadd.s32 %v555, %v533
  %v567 = vadd.s32 %v555, %v534
  %v568 = vadd.s32 %v555, %v535
  %v569 = vadd.s32 %v555, %v536
  %v570 = vadd.s32 %v555, %v537
  %v571 = vadd.s32 %v555, %v538
  %v572 = vadd.s32 %v555, %v539
  %v573 = vadd.s32 %v555, %v540
  %v574 = vadd.s32 %v555, %v541
  %v575 = vadd.s32 %v555, %v542
  %v576 = vadd.s32 %v555, %v543
  %v577 = vadd.s32 %v555, %v544
  %v578 = vadd.s32 %v555, %v545
  %v579 = vadd.s32 %v555, %v546
  %v580 = vadd.s32 %v555, %v547
  %v581 = vadd.s32 %v555, %v548
  %v582 = vadd.s32 %v555, %v549
  %v583 = vadd.s32 %v555, %v550
  %v584 = vadd.s32 %v555, %v551
  %v585 = vadd.s32 %v555, %v552
  %v586 = vadd.s32 %v555, %v553
  %v587 = vadd.s32 %v555, %v554
  %vm588 = vcmp.lt.s32.totalorder %v556, 256
  %vm589 = vcmp.lt.s32.totalorder %v557, 256
  %vm590 = vcmp.lt.s32.totalorder %v558, 256
  %vm591 = vcmp.lt.s32.totalorder %v559, 256
  %vm592 = vcmp.lt.s32.totalorder %v560, 256
  %vm593 = vcmp.lt.s32.totalorder %v561, 256
  %vm594 = vcmp.lt.s32.totalorder %v562, 256
  %vm595 = vcmp.lt.s32.totalorder %v563, 256
  %vm596 = vcmp.lt.s32.totalorder %v564, 256
  %vm597 = vcmp.lt.s32.totalorder %v565, 256
  %vm598 = vcmp.lt.s32.totalorder %v566, 256
  %vm599 = vcmp.lt.s32.totalorder %v567, 256
  %vm600 = vcmp.lt.s32.totalorder %v568, 256
  %vm601 = vcmp.lt.s32.totalorder %v569, 256
  %vm602 = vcmp.lt.s32.totalorder %v570, 256
  %vm603 = vcmp.lt.s32.totalorder %v571, 256
  %vm604 = vcmp.lt.s32.totalorder %v572, 256
  %vm605 = vcmp.lt.s32.totalorder %v573, 256
  %vm606 = vcmp.lt.s32.totalorder %v574, 256
  %vm607 = vcmp.lt.s32.totalorder %v575, 256
  %vm608 = vcmp.lt.s32.totalorder %v576, 256
  %vm609 = vcmp.lt.s32.totalorder %v577, 256
  %vm610 = vcmp.lt.s32.totalorder %v578, 256
  %vm611 = vcmp.lt.s32.totalorder %v579, 256
  %vm612 = vcmp.lt.s32.totalorder %v580, 256
  %vm613 = vcmp.lt.s32.totalorder %v581, 256
  %vm614 = vcmp.lt.s32.totalorder %v582, 256
  %vm615 = vcmp.lt.s32.totalorder %v583, 256
  %vm616 = vcmp.lt.s32.totalorder %v584, 256
  %vm617 = vcmp.lt.s32.totalorder %v585, 256
  %vm618 = vcmp.lt.s32.totalorder %v586, 256
  %vm619 = vcmp.lt.s32.totalorder %v587, 256
  %v620 = vsel %vm588, %v426, 0.0
  %v621 = vsel %vm589, %v429, 0.0
  %v622 = vsel %vm590, %v432, 0.0
  %v623 = vsel %vm591, %v435, 0.0
  %v624 = vsel %vm592, %v438, 0.0
  %v625 = vsel %vm593, %v441, 0.0
  %v626 = vsel %vm594, %v444, 0.0
  %v627 = vsel %vm595, %v447, 0.0
  %v628 = vsel %vm596, %v450, 0.0
  %v629 = vsel %vm597, %v453, 0.0
  %v630 = vsel %vm598, %v456, 0.0
  %v631 = vsel %vm599, %v459, 0.0
  %v632 = vsel %vm600, %v462, 0.0
  %v633 = vsel %vm601, %v465, 0.0
  %v634 = vsel %vm602, %v468, 0.0
  %v635 = vsel %vm603, %v471, 0.0
  %v636 = vsel %vm604, %v474, 0.0
  %v637 = vsel %vm605, %v477, 0.0
  %v638 = vsel %vm606, %v480, 0.0
  %v639 = vsel %vm607, %v483, 0.0
  %v640 = vsel %vm608, %v486, 0.0
  %v641 = vsel %vm609, %v489, 0.0
  %v642 = vsel %vm610, %v492, 0.0
  %v643 = vsel %vm611, %v495, 0.0
  %v644 = vsel %vm612, %v498, 0.0
  %v645 = vsel %vm613, %v501, 0.0
  %v646 = vsel %vm614, %v504, 0.0
  %v647 = vsel %vm615, %v507, 0.0
  %v648 = vsel %vm616, %v510, 0.0
  %v649 = vsel %vm617, %v513, 0.0
  %v650 = vsel %vm618, %v516, 0.0
  %v651 = vsel %vm619, %v519, 0.0
  %v652 = vpack.c.bf16 %v620, %v620
  %v653 = vpack.c.bf16 %v621, %v621
  %v654 = vpack.c.bf16 %v622, %v622
  %v655 = vpack.c.bf16 %v623, %v623
  %v656 = vpack.c.bf16 %v624, %v624
  %v657 = vpack.c.bf16 %v625, %v625
  %v658 = vpack.c.bf16 %v626, %v626
  %v659 = vpack.c.bf16 %v627, %v627
  %v660 = vpack.c.bf16 %v628, %v628
  %v661 = vpack.c.bf16 %v629, %v629
  %v662 = vpack.c.bf16 %v630, %v630
  %v663 = vpack.c.bf16 %v631, %v631
  %v664 = vpack.c.bf16 %v632, %v632
  %v665 = vpack.c.bf16 %v633, %v633
  %v666 = vpack.c.bf16 %v634, %v634
  %v667 = vpack.c.bf16 %v635, %v635
  %v668 = vpack.c.bf16 %v636, %v636
  %v669 = vpack.c.bf16 %v637, %v637
  %v670 = vpack.c.bf16 %v638, %v638
  %v671 = vpack.c.bf16 %v639, %v639
  %v672 = vpack.c.bf16 %v640, %v640
  %v673 = vpack.c.bf16 %v641, %v641
  %v674 = vpack.c.bf16 %v642, %v642
  %v675 = vpack.c.bf16 %v643, %v643
  %v676 = vpack.c.bf16 %v644, %v644
  %v677 = vpack.c.bf16 %v645, %v645
  %v678 = vpack.c.bf16 %v646, %v646
  %v679 = vpack.c.bf16 %v647, %v647
  %v680 = vpack.c.bf16 %v648, %v648
  %v681 = vpack.c.bf16 %v649, %v649
  %v682 = vpack.c.bf16 %v650, %v650
  %v683 = vpack.c.bf16 %v651, %v651
  %vm684 = vcmask 257024
  %685 = vst.msk [vmem:[%s5] sm:$0xf] %vm684, %v652
  %686 = vst.msk [vmem:[%s5 + $0x4] sm:$0xf] %vm684, %v653
  %687 = vst.msk [vmem:[%s5 + $0x8] sm:$0xf] %vm684, %v654
  %688 = vst.msk [vmem:[%s5 + $0xc] sm:$0xf] %vm684, %v655
  %689 = vst.msk [vmem:[%s5 + $0x10] sm:$0xf] %vm684, %v656
  %690 = vst.msk [vmem:[%s5 + $0x14] sm:$0xf] %vm684, %v657
  %691 = vst.msk [vmem:[%s5 + $0x18] sm:$0xf] %vm684, %v658
  %692 = vst.msk [vmem:[%s5 + $0x1c] sm:$0xf] %vm684, %v659
  %693 = vst.msk [vmem:[%s5 + $0x20] sm:$0xf] %vm684, %v660
  %694 = vst.msk [vmem:[%s5 + $0x24] sm:$0xf] %vm684, %v661
  %695 = vst.msk [vmem:[%s5 + $0x28] sm:$0xf] %vm684, %v662
  %696 = vst.msk [vmem:[%s5 + $0x2c] sm:$0xf] %vm684, %v663
  %697 = vst.msk [vmem:[%s5 + $0x30] sm:$0xf] %vm684, %v664
  %698 = vst.msk [vmem:[%s5 + $0x34] sm:$0xf] %vm684, %v665
  %699 = vst.msk [vmem:[%s5 + $0x38] sm:$0xf] %vm684, %v666
  %700 = vst.msk [vmem:[%s5 + $0x3c] sm:$0xf] %vm684, %v667
  %701 = vst.msk [vmem:[%s5 + $0x40] sm:$0xf] %vm684, %v668
  %702 = vst.msk [vmem:[%s5 + $0x44] sm:$0xf] %vm684, %v669
  %703 = vst.msk [vmem:[%s5 + $0x48] sm:$0xf] %vm684, %v670
  %704 = vst.msk [vmem:[%s5 + $0x4c] sm:$0xf] %vm684, %v671
  %705 = vst.msk [vmem:[%s5 + $0x50] sm:$0xf] %vm684, %v672
  %706 = vst.msk [vmem:[%s5 + $0x54] sm:$0xf] %vm684, %v673
  %707 = vst.msk [vmem:[%s5 + $0x58] sm:$0xf] %vm684, %v674
  %708 = vst.msk [vmem:[%s5 + $0x5c] sm:$0xf] %vm684, %v675
  %709 = vst.msk [vmem:[%s5 + $0x60] sm:$0xf] %vm684, %v676
  %710 = vst.msk [vmem:[%s5 + $0x64] sm:$0xf] %vm684, %v677
  %711 = vst.msk [vmem:[%s5 + $0x68] sm:$0xf] %vm684, %v678
  %712 = vst.msk [vmem:[%s5 + $0x6c] sm:$0xf] %vm684, %v679
  %713 = vst.msk [vmem:[%s5 + $0x70] sm:$0xf] %vm684, %v680
  %714 = vst.msk [vmem:[%s5 + $0x74] sm:$0xf] %vm684, %v681
  %715 = vst.msk [vmem:[%s5 + $0x78] sm:$0xf] %vm684, %v682
  %716 = vst.msk [vmem:[%s5 + $0x7c] sm:$0xf] %vm684, %v683
  // Predicated region
  $region22: #{_forward_impl.2} parent=0 // pred_check
    _
  $region23: #{_forward_impl.2} parent=0 // pred_check_branch
    %718 = sbr.rel (0) target = $region25
  $region24: #{_forward_impl.2} parent=0 // pred_region
    _
  $region25: #{_forward_impl.2} parent=0 // pred_fallthru
    _
  // Predicated region
  $region26: #{_forward_impl.2} parent=0 // pred_check
    _
  $region27: #{_forward_impl.2} parent=0 // pred_check_branch
    %720 = sbr.rel (0) target = $region29
  $region28: #{_forward_impl.2} parent=0 // pred_region
    _
  $region29: #{_forward_impl.2} parent=0 // pred_fallthru
    _

// kernel: _forward_impl.3
$region0: #{_forward_impl.3}
  #allocation0 [shape = 'u32[]', space=smem, size = 0x4, offset = 0x4, fixed_abs, tag = 'smem constant byte address 0x4 - core index']
  #allocation1 [shape = 'u32[72,128]{1,0:T(1,128)}', space=vmem, size = 0x9000, scoped, tag = 'internal scratch']
  #allocation2 [shape = 'f32[64,32]{1,0:T(8,128)}', space=vmem, size = 0x8000, scoped, tag = 'scratch operand']
  #allocation3 [shape = 'f32[64,1]{1,0:T(8,128)}', space=vmem, size = 0x8000, scoped, tag = 'scratch operand']
  #allocation4 [shape = 'f32[1,1]{1,0:T(1,128)S(1)}', space=vmem, size = 0x200, scoped, tag = 'scoped memory for _forward_impl.3']
  %s0 = inlined_call_operand.vmem [shape: s32[64,1], index: 0, kind: input, shape index: {}]
  %s1 = inlined_call_operand.vmem [shape: s32[1,256], index: 1, kind: input, shape index: {}]
  %s2 = inlined_call_operand.vmem [shape: bf16[256,32], index: 2, kind: input, shape index: {}]
  %s3 = inlined_call_operand.vmem [shape: f32[32,16], index: 3, kind: input, shape index: {}]
  %s4 = inlined_call_operand.vmem [shape: f32[1,16], index: 4, kind: input, shape index: {}]
  %s5 = inlined_call_operand.vmem [shape: f32[16,32], index: 5, kind: input, shape index: {}]
  %s6 = inlined_call_operand.vmem [shape: f32[1,32], index: 6, kind: input, shape index: {}]
  %s7 = inlined_call_operand.vmem [shape: f32[32,1], index: 7, kind: input, shape index: {}]
  %s8 = inlined_call_operand.<no memory space> [shape: f32[1,1], index: 8, kind: input, shape index: {}]
  %s9 = inlined_call_operand.vmem [shape: f32[64,1], index: 9, kind: output, shape index: {}]
  %s10 = sld [smem:[#allocation0]]
  $region54: #{_forward_impl.3} parent=0
    _
  %s12 = ssub.s32 1, %s10
  %s13 = scalar_select 0, %s12, %s10
  %v14 = vstv %s8
  %15 = vst [vmem:[#allocation4] sm:$0x1] %v14
  // Predicated region
  $region2: #{_forward_impl.3} parent=0 // pred_check
    _
  $region3: #{_forward_impl.3} parent=0 // pred_check_branch
    %17 = sbr.rel (0) target = $region5
  $region4: #{_forward_impl.3} parent=0 // pred_region
    _
  $region5: #{_forward_impl.3} parent=0 // pred_fallthru
    _
  // Predicated region
  $region6: #{_forward_impl.3} parent=0 // pred_check
    _
  $region7: #{_forward_impl.3} parent=0 // pred_check_branch
    %19 = sbr.rel (0) target = $region9
  $region8: #{_forward_impl.3} parent=0 // pred_region
    _
  $region9: #{_forward_impl.3} parent=0 // pred_fallthru
    _
  // Predicated region
  $region10: #{_forward_impl.3} parent=0 // pred_check
    _
  $region11: #{_forward_impl.3} parent=0 // pred_check_branch
    %21 = sbr.rel (0) target = $region13
  $region12: #{_forward_impl.3} parent=0 // pred_region
    _
  $region13: #{_forward_impl.3} parent=0 // pred_fallthru
    _
  // Predicated region
  $region14: #{_forward_impl.3} parent=0 // pred_check
    _
  $region15: #{_forward_impl.3} parent=0 // pred_check_branch
    %23 = sbr.rel (0) target = $region17
  $region16: #{_forward_impl.3} parent=0 // pred_region
    _
  $region17: #{_forward_impl.3} parent=0 // pred_fallthru
    _
  // Predicated region
  $region18: #{_forward_impl.3} parent=0 // pred_check
    _
  $region19: #{_forward_impl.3} parent=0 // pred_check_branch
    %25 = sbr.rel (0) target = $region21
  $region20: #{_forward_impl.3} parent=0 // pred_region
    _
  $region21: #{_forward_impl.3} parent=0 // pred_fallthru
    _
  // Predicated region
  $region22: #{_forward_impl.3} parent=0 // pred_check
    _
  $region23: #{_forward_impl.3} parent=0 // pred_check_branch
    %27 = sbr.rel (0) target = $region25
  $region24: #{_forward_impl.3} parent=0 // pred_region
    _
  $region25: #{_forward_impl.3} parent=0 // pred_fallthru
    _
  // Predicated region
  $region26: #{_forward_impl.3} parent=0 // pred_check
    _
  $region27: #{_forward_impl.3} parent=0 // pred_check_branch
    %29 = sbr.rel (0) target = $region29
  $region28: #{_forward_impl.3} parent=0 // pred_region
    _
  $region29: #{_forward_impl.3} parent=0 // pred_fallthru
    _
  // Predicated region
  $region30: #{_forward_impl.3} parent=0 // pred_check
    _
  $region31: #{_forward_impl.3} parent=0 // pred_check_branch
    %31 = sbr.rel (0) target = $region33
  $region32: #{_forward_impl.3} parent=0 // pred_region
    _
  $region33: #{_forward_impl.3} parent=0 // pred_fallthru
    _
  // Predicated region
  $region34: #{_forward_impl.3} parent=0 // pred_check
    _
  $region35: #{_forward_impl.3} parent=0 // pred_check_branch
    %33 = sbr.rel (0) target = $region37
  $region36: #{_forward_impl.3} parent=0 // pred_region
    _
  $region37: #{_forward_impl.3} parent=0 // pred_fallthru
    _
  %p34 = scmp.eq.s32.totalorder 0, 0
  // Predicated region
  $region38: #{_forward_impl.3} parent=0 // pred_check
    %p35 = pneg %p34
  $region39: #{_forward_impl.3} parent=0 // pred_check_branch
    %37 = sbr.rel (%p35) target = $region41
  $region40: #{_forward_impl.3} parent=0 // pred_region
    %vm38 = vcmask 261120
    %39 = vst.msk [vmem:[#allocation2] sm:$0xff] %vm38, 0.0
    %40 = vst.msk [vmem:[#allocation2 + $0x8] sm:$0xff] %vm38, 0.0
    %41 = vst.msk [vmem:[#allocation2 + $0x10] sm:$0xff] %vm38, 0.0
    %42 = vst.msk [vmem:[#allocation2 + $0x18] sm:$0xff] %vm38, 0.0
    %43 = vst.msk [vmem:[#allocation2 + $0x20] sm:$0xff] %vm38, 0.0
    %44 = vst.msk [vmem:[#allocation2 + $0x28] sm:$0xff] %vm38, 0.0
    %45 = vst.msk [vmem:[#allocation2 + $0x30] sm:$0xff] %vm38, 0.0
    %46 = vst.msk [vmem:[#allocation2 + $0x38] sm:$0xff] %vm38, 0.0
    %vm47 = vcmask 7168
    %48 = vst.msk [vmem:[#allocation3] sm:$0xff] %vm47, 0.0
    %49 = vst.msk [vmem:[#allocation3 + $0x8] sm:$0xff] %vm47, 0.0
    %50 = vst.msk [vmem:[#allocation3 + $0x10] sm:$0xff] %vm47, 0.0
    %51 = vst.msk [vmem:[#allocation3 + $0x18] sm:$0xff] %vm47, 0.0
    %52 = vst.msk [vmem:[#allocation3 + $0x20] sm:$0xff] %vm47, 0.0
    %53 = vst.msk [vmem:[#allocation3 + $0x28] sm:$0xff] %vm47, 0.0
    %54 = vst.msk [vmem:[#allocation3 + $0x30] sm:$0xff] %vm47, 0.0
    %55 = vst.msk [vmem:[#allocation3 + $0x38] sm:$0xff] %vm47, 0.0
  $region41: #{_forward_impl.3} parent=0 // pred_fallthru
    _
  %v56 = vld [vmem:[%s0] sm:$0xff]
  %v57 = vld [vmem:[%s0 + $0x8] sm:$0xff]
  %v58 = vld [vmem:[%s0 + $0x10] sm:$0xff]
  %v59 = vld [vmem:[%s0 + $0x18] sm:$0xff]
  %v60 = vld [vmem:[%s0 + $0x20] sm:$0xff]
  %v61 = vld [vmem:[%s0 + $0x28] sm:$0xff]
  %v62 = vld [vmem:[%s0 + $0x30] sm:$0xff]
  %v63 = vld [vmem:[%s0 + $0x38] sm:$0xff]
  %v64 = vld [vmem:[%s1] sm:$0x3]
  %65 = vset.pattern.permute.xlu0 0
  %66 = vperm.xlu0 %65, %v56
  %v67 = vpop.permute.xlu0 %66
  %68 = vset.pattern.permute.xlu0 0
  %69 = vperm.xlu0 %68, %v57
  %v70 = vpop.permute.xlu0 %69
  %71 = vset.pattern.permute.xlu0 0
  %72 = vperm.xlu0 %71, %v58
  %v73 = vpop.permute.xlu0 %72
  %74 = vset.pattern.permute.xlu0 0
  %75 = vperm.xlu0 %74, %v59
  %v76 = vpop.permute.xlu0 %75
  %77 = vset.pattern.permute.xlu0 0
  %78 = vperm.xlu0 %77, %v60
  %v79 = vpop.permute.xlu0 %78
  %80 = vset.pattern.permute.xlu0 0
  %81 = vperm.xlu0 %80, %v61
  %v82 = vpop.permute.xlu0 %81
  %83 = vset.pattern.permute.xlu0 0
  %84 = vperm.xlu0 %83, %v62
  %v85 = vpop.permute.xlu0 %84
  %86 = vset.pattern.permute.xlu0 0
  %87 = vperm.xlu0 %86, %v63
  %v88 = vpop.permute.xlu0 %87
  %v89 = vperm.slane %v64, 0
  %v90 = vperm.slane %v64, 1
  %vm91 = vcmp.eq.s32.totalorder %v67, %v89
  %vm92 = vcmp.eq.s32.totalorder %v67, %v90
  %vm93 = vcmp.eq.s32.totalorder %v70, %v89
  %vm94 = vcmp.eq.s32.totalorder %v70, %v90
  %vm95 = vcmp.eq.s32.totalorder %v73, %v89
  %vm96 = vcmp.eq.s32.totalorder %v73, %v90
  %vm97 = vcmp.eq.s32.totalorder %v76, %v89
  %vm98 = vcmp.eq.s32.totalorder %v76, %v90
  %vm99 = vcmp.eq.s32.totalorder %v79, %v89
  %vm100 = vcmp.eq.s32.totalorder %v79, %v90
  %vm101 = vcmp.eq.s32.totalorder %v82, %v89
  %vm102 = vcmp.eq.s32.totalorder %v82, %v90
  %vm103 = vcmp.eq.s32.totalorder %v85, %v89
  %vm104 = vcmp.eq.s32.totalorder %v85, %v90
  %vm105 = vcmp.eq.s32.totalorder %v88, %v89
  %vm106 = vcmp.eq.s32.totalorder %v88, %v90
  %v107 = vsel %vm91, 1, 0
  %v108 = vsel %vm92, 1, 0
  %v109 = vsel %vm93, 1, 0
  %v110 = vsel %vm94, 1, 0
  %v111 = vsel %vm95, 1, 0
  %v112 = vsel %vm96, 1, 0
  %v113 = vsel %vm97, 1, 0
  %v114 = vsel %vm98, 1, 0
  %v115 = vsel %vm99, 1, 0
  %v116 = vsel %vm100, 1, 0
  %v117 = vsel %vm101, 1, 0
  %v118 = vsel %vm102, 1, 0
  %v119 = vsel %vm103, 1, 0
  %v120 = vsel %vm104, 1, 0
  %v121 = vsel %vm105, 1, 0
  %v122 = vsel %vm106, 1, 0
  %v123 = vcvt.s32.f32 %v107
  %v124 = vcvt.s32.f32 %v108
  %v125 = vcvt.s32.f32 %v109
  %v126 = vcvt.s32.f32 %v110
  %v127 = vcvt.s32.f32 %v111
  %v128 = vcvt.s32.f32 %v112
  %v129 = vcvt.s32.f32 %v113
  %v130 = vcvt.s32.f32 %v114
  %v131 = vcvt.s32.f32 %v115
  %v132 = vcvt.s32.f32 %v116
  %v133 = vcvt.s32.f32 %v117
  %v134 = vcvt.s32.f32 %v118
  %v135 = vcvt.s32.f32 %v119
  %v136 = vcvt.s32.f32 %v120
  %v137 = vcvt.s32.f32 %v121
  %v138 = vcvt.s32.f32 %v122
  %v139 = vpack.c.bf16 %v125, %v123
  %v140 = vpack.c.bf16 %v126, %v124
  %v141 = vpack.c.bf16 %v129, %v127
  %v142 = vpack.c.bf16 %v130, %v128
  %v143 = vpack.c.bf16 %v133, %v131
  %v144 = vpack.c.bf16 %v134, %v132
  %v145 = vpack.c.bf16 %v137, %v135
  %v146 = vpack.c.bf16 %v138, %v136
  %v147 = vld [vmem:[#allocation2] sm:$0xff]
  %v148 = vld [vmem:[#allocation2 + $0x8] sm:$0xff]
  %v149 = vld [vmem:[#allocation2 + $0x10] sm:$0xff]
  %v150 = vld [vmem:[#allocation2 + $0x18] sm:$0xff]
  %v151 = vld [vmem:[#allocation2 + $0x20] sm:$0xff]
  %v152 = vld [vmem:[#allocation2 + $0x28] sm:$0xff]
  %v153 = vld [vmem:[#allocation2 + $0x30] sm:$0xff]
  %v154 = vld [vmem:[#allocation2 + $0x38] sm:$0xff]
  %v155 = vld [vmem:[%s2] sm:$0xf]
  %v156 = vld [vmem:[%s2 + $0x4] sm:$0xf]
  %v157 = vld [vmem:[%s2 + $0x8] sm:$0xf]
  %v158 = vld [vmem:[%s2 + $0xc] sm:$0xf]
  %v159 = vld [vmem:[%s2 + $0x10] sm:$0xf]
  %v160 = vld [vmem:[%s2 + $0x14] sm:$0xf]
  %v161 = vld [vmem:[%s2 + $0x18] sm:$0xf]
  %v162 = vld [vmem:[%s2 + $0x1c] sm:$0xf]
  %v163 = vld [vmem:[%s2 + $0x20] sm:$0xf]
  %v164 = vld [vmem:[%s2 + $0x24] sm:$0xf]
  %v165 = vld [vmem:[%s2 + $0x28] sm:$0xf]
  %v166 = vld [vmem:[%s2 + $0x2c] sm:$0xf]
  %v167 = vld [vmem:[%s2 + $0x30] sm:$0xf]
  %v168 = vld [vmem:[%s2 + $0x34] sm:$0xf]
  %v169 = vld [vmem:[%s2 + $0x38] sm:$0xf]
  %v170 = vld [vmem:[%s2 + $0x3c] sm:$0xf]
  %v171 = vld [vmem:[%s2 + $0x40] sm:$0xf]
  %v172 = vld [vmem:[%s2 + $0x44] sm:$0xf]
  %v173 = vld [vmem:[%s2 + $0x48] sm:$0xf]
  %v174 = vld [vmem:[%s2 + $0x4c] sm:$0xf]
  %v175 = vld [vmem:[%s2 + $0x50] sm:$0xf]
  %v176 = vld [vmem:[%s2 + $0x54] sm:$0xf]
  %v177 = vld [vmem:[%s2 + $0x58] sm:$0xf]
  %v178 = vld [vmem:[%s2 + $0x5c] sm:$0xf]
  %v179 = vld [vmem:[%s2 + $0x60] sm:$0xf]
  %v180 = vld [vmem:[%s2 + $0x64] sm:$0xf]
  %v181 = vld [vmem:[%s2 + $0x68] sm:$0xf]
  %v182 = vld [vmem:[%s2 + $0x6c] sm:$0xf]
  %v183 = vld [vmem:[%s2 + $0x70] sm:$0xf]
  %v184 = vld [vmem:[%s2 + $0x74] sm:$0xf]
  %v185 = vld [vmem:[%s2 + $0x78] sm:$0xf]
  %v186 = vld [vmem:[%s2 + $0x7c] sm:$0xf]
  %v219 = vunpack.c.l.b16 %v155
  %v220 = vunpack.c.l.b16 %v156
  %v221 = vunpack.c.l.b16 %v157
  %v222 = vunpack.c.l.b16 %v158
  %v223 = vunpack.c.l.b16 %v159
  %v224 = vunpack.c.l.b16 %v160
  %v225 = vunpack.c.l.b16 %v161
  %v226 = vunpack.c.l.b16 %v162
  %v227 = vunpack.c.l.b16 %v163
  %v228 = vunpack.c.l.b16 %v164
  %v229 = vunpack.c.l.b16 %v165
  %v230 = vunpack.c.l.b16 %v166
  %v231 = vunpack.c.l.b16 %v167
  %v232 = vunpack.c.l.b16 %v168
  %v233 = vunpack.c.l.b16 %v169
  %v234 = vunpack.c.l.b16 %v170
  %v235 = vunpack.c.l.b16 %v171
  %v236 = vunpack.c.l.b16 %v172
  %v237 = vunpack.c.l.b16 %v173
  %v238 = vunpack.c.l.b16 %v174
  %v239 = vunpack.c.l.b16 %v175
  %v240 = vunpack.c.l.b16 %v176
  %v241 = vunpack.c.l.b16 %v177
  %v242 = vunpack.c.l.b16 %v178
  %v243 = vunpack.c.l.b16 %v179
  %v244 = vunpack.c.l.b16 %v180
  %v245 = vunpack.c.l.b16 %v181
  %v246 = vunpack.c.l.b16 %v182
  %v247 = vunpack.c.l.b16 %v183
  %v248 = vunpack.c.l.b16 %v184
  %v249 = vunpack.c.l.b16 %v185
  %v250 = vunpack.c.l.b16 %v186
  %v251 = vpack.c.b16 %v220, %v219
  %v252 = vpack.c.b16 %v222, %v221
  %v253 = vpack.c.b16 %v224, %v223
  %v254 = vpack.c.b16 %v226, %v225
  %v255 = vpack.c.b16 %v228, %v227
  %v256 = vpack.c.b16 %v230, %v229
  %v257 = vpack.c.b16 %v232, %v231
  %v258 = vpack.c.b16 %v234, %v233
  %v259 = vpack.c.b16 %v236, %v235
  %v260 = vpack.c.b16 %v238, %v237
  %v261 = vpack.c.b16 %v240, %v239
  %v262 = vpack.c.b16 %v242, %v241
  %v263 = vpack.c.b16 %v244, %v243
  %v264 = vpack.c.b16 %v246, %v245
  %v265 = vpack.c.b16 %v248, %v247
  %v266 = vpack.c.b16 %v250, %v249
  %283 = vmatpush.bf16.msra.mxu0 %v258
  %284 = vmatpush.bf16.msra.mxu0 %v257
  %285 = vmatpush.bf16.msra.mxu0 %v256
  %286 = vmatpush.bf16.msra.mxu0 %v255
  %287 = vmatpush.bf16.msra.mxu0 %v254
  %288 = vmatpush.bf16.msra.mxu0 %v253
  %289 = vmatpush.bf16.msra.mxu0 %v252
  %290 = vmatpush.bf16.msra.mxu0 %v251
  %291 = vmatmul.bf16.gmra.mxu0 %v139
  %v292 = vpop.f32.mrf.mxu0
  %v293 = vadd.f32 0.0, %v292
  %v294 = vpop.f32.mrf.mxu0
  %v295 = vadd.f32 0.0, %v294
  %296 = vmatmul.bf16.gmra.mxu0 %v141
  %v297 = vpop.f32.mrf.mxu0
  %v298 = vadd.f32 0.0, %v297
  %v299 = vpop.f32.mrf.mxu0
  %v300 = vadd.f32 0.0, %v299
  %301 = vmatmul.bf16.gmra.mxu0 %v143
  %v302 = vpop.f32.mrf.mxu0
  %v303 = vadd.f32 0.0, %v302
  %v304 = vpop.f32.mrf.mxu0
  %v305 = vadd.f32 0.0, %v304
  %306 = vmatmul.bf16.gmra.mxu0 %v145
  %v307 = vpop.f32.mrf.mxu0
  %v308 = vadd.f32 0.0, %v307
  %v309 = vpop.f32.mrf.mxu0
  %v310 = vadd.f32 0.0, %v309
  %311 = vdwg.mxu0
  %312 = vmatpush.bf16.msra.mxu0 %v266
  %313 = vmatpush.bf16.msra.mxu0 %v265
  %314 = vmatpush.bf16.msra.mxu0 %v264
  %315 = vmatpush.bf16.msra.mxu0 %v263
  %316 = vmatpush.bf16.msra.mxu0 %v262
  %317 = vmatpush.bf16.msra.mxu0 %v261
  %318 = vmatpush.bf16.msra.mxu0 %v260
  %319 = vmatpush.bf16.msra.mxu0 %v259
  %320 = vmatmul.bf16.gmra.mxu0 %v140
  %v321 = vpop.f32.mrf.mxu0
  %v322 = vadd.f32 %v293, %v321
  %v323 = vpop.f32.mrf.mxu0
  %v324 = vadd.f32 %v295, %v323
  %325 = vmatmul.bf16.gmra.mxu0 %v142
  %v326 = vpop.f32.mrf.mxu0
  %v327 = vadd.f32 %v298, %v326
  %v328 = vpop.f32.mrf.mxu0
  %v329 = vadd.f32 %v300, %v328
  %330 = vmatmul.bf16.gmra.mxu0 %v144
  %v331 = vpop.f32.mrf.mxu0
  %v332 = vadd.f32 %v303, %v331
  %v333 = vpop.f32.mrf.mxu0
  %v334 = vadd.f32 %v305, %v333
  %335 = vmatmul.bf16.gmra.mxu0 %v146
  %v336 = vpop.f32.mrf.mxu0
  %v337 = vadd.f32 %v308, %v336
  %v338 = vpop.f32.mrf.mxu0
  %v339 = vadd.f32 %v310, %v338
  %340 = vdwg.mxu0
  %v341 = vadd.f32 %v147, %v322
  %v342 = vadd.f32 %v148, %v324
  %v343 = vadd.f32 %v149, %v327
  %v344 = vadd.f32 %v150, %v329
  %v345 = vadd.f32 %v151, %v332
  %v346 = vadd.f32 %v152, %v334
  %v347 = vadd.f32 %v153, %v337
  %v348 = vadd.f32 %v154, %v339
  %vm349 = vcmask 261120
  %350 = vst.msk [vmem:[#allocation2] sm:$0xff] %vm349, %v341
  %351 = vst.msk [vmem:[#allocation2 + $0x8] sm:$0xff] %vm349, %v342
  %352 = vst.msk [vmem:[#allocation2 + $0x10] sm:$0xff] %vm349, %v343
  %353 = vst.msk [vmem:[#allocation2 + $0x18] sm:$0xff] %vm349, %v344
  %354 = vst.msk [vmem:[#allocation2 + $0x20] sm:$0xff] %vm349, %v345
  %355 = vst.msk [vmem:[#allocation2 + $0x28] sm:$0xff] %vm349, %v346
  %356 = vst.msk [vmem:[#allocation2 + $0x30] sm:$0xff] %vm349, %v347
  %357 = vst.msk [vmem:[#allocation2 + $0x38] sm:$0xff] %vm349, %v348
  %v358 = vld [vmem:[#allocation3] sm:$0xff]
  %v359 = vld [vmem:[#allocation3 + $0x8] sm:$0xff]
  %v360 = vld [vmem:[#allocation3 + $0x10] sm:$0xff]
  %v361 = vld [vmem:[#allocation3 + $0x18] sm:$0xff]
  %v362 = vld [vmem:[#allocation3 + $0x20] sm:$0xff]
  %v363 = vld [vmem:[#allocation3 + $0x28] sm:$0xff]
  %v364 = vld [vmem:[#allocation3 + $0x30] sm:$0xff]
  %v365 = vld [vmem:[#allocation3 + $0x38] sm:$0xff]
  %v366 = vadd.f32 %v123, %v124
  %367 = vadd.xlane.f32.xlu0 %v366
  %v368 = vpop.xlane.xlu0 %367
  %v369 = vadd.f32 %v125, %v126
  %370 = vadd.xlane.f32.xlu0 %v369
  %v371 = vpop.xlane.xlu0 %370
  %v372 = vadd.f32 %v127, %v128
  %373 = vadd.xlane.f32.xlu0 %v372
  %v374 = vpop.xlane.xlu0 %373
  %v375 = vadd.f32 %v129, %v130
  %376 = vadd.xlane.f32.xlu0 %v375
  %v377 = vpop.xlane.xlu0 %376
  %v378 = vadd.f32 %v131, %v132
  %379 = vadd.xlane.f32.xlu0 %v378
  %v380 = vpop.xlane.xlu0 %379
  %v381 = vadd.f32 %v133, %v134
  %382 = vadd.xlane.f32.xlu0 %v381
  %v383 = vpop.xlane.xlu0 %382
  %v384 = vadd.f32 %v135, %v136
  %385 = vadd.xlane.f32.xlu0 %v384
  %v386 = vpop.xlane.xlu0 %385
  %v387 = vadd.f32 %v137, %v138
  %388 = vadd.xlane.f32.xlu0 %v387
  %v389 = vpop.xlane.xlu0 %388
  %v390 = vadd.f32 %v358, %v368
  %v391 = vadd.f32 %v359, %v371
  %v392 = vadd.f32 %v360, %v374
  %v393 = vadd.f32 %v361, %v377
  %v394 = vadd.f32 %v362, %v380
  %v395 = vadd.f32 %v363, %v383
  %v396 = vadd.f32 %v364, %v386
  %v397 = vadd.f32 %v365, %v389
  %vm398 = vcmask 7168
  %399 = vst.msk [vmem:[#allocation3] sm:$0xff] %vm398, %v390
  %400 = vst.msk [vmem:[#allocation3 + $0x8] sm:$0xff] %vm398, %v391
  %401 = vst.msk [vmem:[#allocation3 + $0x10] sm:$0xff] %vm398, %v392
  %402 = vst.msk [vmem:[#allocation3 + $0x18] sm:$0xff] %vm398, %v393
  %403 = vst.msk [vmem:[#allocation3 + $0x20] sm:$0xff] %vm398, %v394
  %404 = vst.msk [vmem:[#allocation3 + $0x28] sm:$0xff] %vm398, %v395
  %405 = vst.msk [vmem:[#allocation3 + $0x30] sm:$0xff] %vm398, %v396
  %406 = vst.msk [vmem:[#allocation3 + $0x38] sm:$0xff] %vm398, %v397
  // Predicated region
  $region42: #{_forward_impl.3} parent=0 // pred_check
    %p407 = pneg %p34
  $region43: #{_forward_impl.3} parent=0 // pred_check_branch
    %409 = sbr.rel (%p407) target = $region45
  $region44: #{_forward_impl.3} parent=0 // pred_region
    %v410 = vld [vmem:[#allocation2] sm:$0xff]
    %v411 = vld [vmem:[#allocation2 + $0x8] sm:$0xff]
    %v412 = vld [vmem:[#allocation2 + $0x10] sm:$0xff]
    %v413 = vld [vmem:[#allocation2 + $0x18] sm:$0xff]
    %v414 = vld [vmem:[#allocation2 + $0x20] sm:$0xff]
    %v415 = vld [vmem:[#allocation2 + $0x28] sm:$0xff]
    %v416 = vld [vmem:[#allocation2 + $0x30] sm:$0xff]
    %v417 = vld [vmem:[#allocation2 + $0x38] sm:$0xff]
    %v418 = vld [vmem:[#allocation3] sm:$0xff]
    %v419 = vld [vmem:[#allocation3 + $0x8] sm:$0xff]
    %v420 = vld [vmem:[#allocation3 + $0x10] sm:$0xff]
    %v421 = vld [vmem:[#allocation3 + $0x18] sm:$0xff]
    %v422 = vld [vmem:[#allocation3 + $0x20] sm:$0xff]
    %v423 = vld [vmem:[#allocation3 + $0x28] sm:$0xff]
    %v424 = vld [vmem:[#allocation3 + $0x30] sm:$0xff]
    %v425 = vld [vmem:[#allocation3 + $0x38] sm:$0xff]
    %v426 = vmax.f32 %v418, 1.0
    %v427 = vmax.f32 %v419, 1.0
    %v428 = vmax.f32 %v420, 1.0
    %v429 = vmax.f32 %v421, 1.0
    %v430 = vmax.f32 %v422, 1.0
    %v431 = vmax.f32 %v423, 1.0
    %v432 = vmax.f32 %v424, 1.0
    %v433 = vmax.f32 %v425, 1.0
    %435 = vset.pattern.permute.xlu0 0
    %436 = vperm.xlu0 %435, %v426
    %v437 = vpop.permute.xlu0 %436
    %440 = vset.pattern.permute.xlu0 0
    %441 = vperm.xlu0 %440, %v427
    %v442 = vpop.permute.xlu0 %441
    %445 = vset.pattern.permute.xlu0 0
    %446 = vperm.xlu0 %445, %v428
    %v447 = vpop.permute.xlu0 %446
    %450 = vset.pattern.permute.xlu0 0
    %451 = vperm.xlu0 %450, %v429
    %v452 = vpop.permute.xlu0 %451
    %455 = vset.pattern.permute.xlu0 0
    %456 = vperm.xlu0 %455, %v430
    %v457 = vpop.permute.xlu0 %456
    %460 = vset.pattern.permute.xlu0 0
    %461 = vperm.xlu0 %460, %v431
    %v462 = vpop.permute.xlu0 %461
    %465 = vset.pattern.permute.xlu0 0
    %466 = vperm.xlu0 %465, %v432
    %v467 = vpop.permute.xlu0 %466
    %470 = vset.pattern.permute.xlu0 0
    %471 = vperm.xlu0 %470, %v433
    %v472 = vpop.permute.xlu0 %471
    %v474 = vrcp.pop %v437
    %v475 = vmul.f32 %v437, %v474
    %v476 = vsub.f32 1.0, %v475
    %v477 = vmul.f32 %v474, %v476
    %v478 = vadd.f32 %v474, %v477
    %vm479 = vweird.f32 %v437
    %vm480 = vweird.f32 %v474
    %vm481 = vmor %vm479, %vm480
    %v482 = vsel %vm481, %v474, %v478
    %v483 = vand.u32 2147483647, %v437
    %vm484 = vcmp.eq.f32.partialorder %v483, 8.507059e+37
    %v485 = vand.u32 %v437, 2147483648
    %v486 = vor.u32 1.1754944e-38, %v485
    %v487 = vsel %vm484, %v486, %v482
    %v488 = vmul.f32 %v410, %v487
    %v489 = vrcp.pop %v442
    %v490 = vmul.f32 %v442, %v489
    %v491 = vsub.f32 1.0, %v490
    %v492 = vmul.f32 %v489, %v491
    %v493 = vadd.f32 %v489, %v492
    %vm494 = vweird.f32 %v442
    %vm495 = vweird.f32 %v489
    %vm496 = vmor %vm494, %vm495
    %v497 = vsel %vm496, %v489, %v493
    %v498 = vand.u32 2147483647, %v442
    %vm499 = vcmp.eq.f32.partialorder %v498, 8.507059e+37
    %v500 = vand.u32 %v442, 2147483648
    %v501 = vor.u32 1.1754944e-38, %v500
    %v502 = vsel %vm499, %v501, %v497
    %v503 = vmul.f32 %v411, %v502
    %v504 = vrcp.pop %v447
    %v505 = vmul.f32 %v447, %v504
    %v506 = vsub.f32 1.0, %v505
    %v507 = vmul.f32 %v504, %v506
    %v508 = vadd.f32 %v504, %v507
    %vm509 = vweird.f32 %v447
    %vm510 = vweird.f32 %v504
    %vm511 = vmor %vm509, %vm510
    %v512 = vsel %vm511, %v504, %v508
    %v513 = vand.u32 2147483647, %v447
    %vm514 = vcmp.eq.f32.partialorder %v513, 8.507059e+37
    %v515 = vand.u32 %v447, 2147483648
    %v516 = vor.u32 1.1754944e-38, %v515
    %v517 = vsel %vm514, %v516, %v512
    %v518 = vmul.f32 %v412, %v517
    %v519 = vrcp.pop %v452
    %v520 = vmul.f32 %v452, %v519
    %v521 = vsub.f32 1.0, %v520
    %v522 = vmul.f32 %v519, %v521
    %v523 = vadd.f32 %v519, %v522
    %vm524 = vweird.f32 %v452
    %vm525 = vweird.f32 %v519
    %vm526 = vmor %vm524, %vm525
    %v527 = vsel %vm526, %v519, %v523
    %v528 = vand.u32 2147483647, %v452
    %vm529 = vcmp.eq.f32.partialorder %v528, 8.507059e+37
    %v530 = vand.u32 %v452, 2147483648
    %v531 = vor.u32 1.1754944e-38, %v530
    %v532 = vsel %vm529, %v531, %v527
    %v533 = vmul.f32 %v413, %v532
    %v534 = vrcp.pop %v457
    %v535 = vmul.f32 %v457, %v534
    %v536 = vsub.f32 1.0, %v535
    %v537 = vmul.f32 %v534, %v536
    %v538 = vadd.f32 %v534, %v537
    %vm539 = vweird.f32 %v457
    %vm540 = vweird.f32 %v534
    %vm541 = vmor %vm539, %vm540
    %v542 = vsel %vm541, %v534, %v538
    %v543 = vand.u32 2147483647, %v457
    %vm544 = vcmp.eq.f32.partialorder %v543, 8.507059e+37
    %v545 = vand.u32 %v457, 2147483648
    %v546 = vor.u32 1.1754944e-38, %v545
    %v547 = vsel %vm544, %v546, %v542
    %v548 = vmul.f32 %v414, %v547
    %v549 = vrcp.pop %v462
    %v550 = vmul.f32 %v462, %v549
    %v551 = vsub.f32 1.0, %v550
    %v552 = vmul.f32 %v549, %v551
    %v553 = vadd.f32 %v549, %v552
    %vm554 = vweird.f32 %v462
    %vm555 = vweird.f32 %v549
    %vm556 = vmor %vm554, %vm555
    %v557 = vsel %vm556, %v549, %v553
    %v558 = vand.u32 2147483647, %v462
    %vm559 = vcmp.eq.f32.partialorder %v558, 8.507059e+37
    %v560 = vand.u32 %v462, 2147483648
    %v561 = vor.u32 1.1754944e-38, %v560
    %v562 = vsel %vm559, %v561, %v557
    %v563 = vmul.f32 %v415, %v562
    %v564 = vrcp.pop %v467
    %v565 = vmul.f32 %v467, %v564
    %v566 = vsub.f32 1.0, %v565
    %v567 = vmul.f32 %v564, %v566
    %v568 = vadd.f32 %v564, %v567
    %vm569 = vweird.f32 %v467
    %vm570 = vweird.f32 %v564
    %vm571 = vmor %vm569, %vm570
    %v572 = vsel %vm571, %v564, %v568
    %v573 = vand.u32 2147483647, %v467
    %vm574 = vcmp.eq.f32.partialorder %v573, 8.507059e+37
    %v575 = vand.u32 %v467, 2147483648
    %v576 = vor.u32 1.1754944e-38, %v575
    %v577 = vsel %vm574, %v576, %v572
    %v578 = vmul.f32 %v416, %v577
    %v579 = vrcp.pop %v472
    %v580 = vmul.f32 %v472, %v579
    %v581 = vsub.f32 1.0, %v580
    %v582 = vmul.f32 %v579, %v581
    %v583 = vadd.f32 %v579, %v582
    %vm584 = vweird.f32 %v472
    %vm585 = vweird.f32 %v579
    %vm586 = vmor %vm584, %vm585
    %v587 = vsel %vm586, %v579, %v583
    %v588 = vand.u32 2147483647, %v472
    %vm589 = vcmp.eq.f32.partialorder %v588, 8.507059e+37
    %v590 = vand.u32 %v472, 2147483648
    %v591 = vor.u32 1.1754944e-38, %v590
    %v592 = vsel %vm589, %v591, %v587
    %v593 = vmul.f32 %v417, %v592
    %v594 = vld [vmem:[%s3] sm:$0xff]
    %v595 = vld [vmem:[%s3 + $0x8] sm:$0xff]
    %v596 = vld [vmem:[%s3 + $0x10] sm:$0xff]
    %v597 = vld [vmem:[%s3 + $0x18] sm:$0xff]
    %v598 = vld [vmem:[%s4] sm:$0x1]
    %v600 = vperm.slane %v598, 0
    %v603 = vsel %vm349, %v488, 0
    %v606 = vsel %vm349, %v503, 0
    %v609 = vsel %vm349, %v518, 0
    %v612 = vsel %vm349, %v533, 0
    %v615 = vsel %vm349, %v548, 0
    %v618 = vsel %vm349, %v563, 0
    %v621 = vsel %vm349, %v578, 0
    %v624 = vsel %vm349, %v593, 0
    %626 = vmatpush.msra.mxu0 0.0
    %627 = vmatpush.msra.mxu0 0.0
    %628 = vmatpush.msra.mxu0 0.0
    %629 = vmatpush.msra.mxu0 0.0
    %630 = vmatpush.msra.mxu0 0.0
    %631 = vmatpush.msra.mxu0 0.0
    %632 = vmatpush.msra.mxu0 0.0
    %633 = vmatpush.msra.mxu0 0.0
    %634 = vmatpush.msra.mxu0 0.0
    %635 = vmatpush.msra.mxu0 0.0
    %636 = vmatpush.msra.mxu0 0.0
    %637 = vmatpush.msra.mxu0 0.0
    %638 = vmatpush.msra.mxu0 %v597
    %639 = vmatpush.msra.mxu0 %v596
    %640 = vmatpush.msra.mxu0 %v595
    %641 = vmatpush.msra.mxu0 %v594
    %642 = vmatmul.f32.gmra.mxu0 %v603
    %v643 = vpop.f32.mrf.mxu0
    %v644 = vadd.f32 %v600, %v643
    %645 = vmatmul.f32.gmra.mxu0 %v606
    %v646 = vpop.f32.mrf.mxu0
    %v647 = vadd.f32 %v600, %v646
    %648 = vmatmul.f32.gmra.mxu0 %v609
    %v649 = vpop.f32.mrf.mxu0
    %v650 = vadd.f32 %v600, %v649
    %651 = vmatmul.f32.gmra.mxu0 %v612
    %v652 = vpop.f32.mrf.mxu0
    %v653 = vadd.f32 %v600, %v652
    %654 = vmatmul.f32.gmra.mxu0 %v615
    %v655 = vpop.f32.mrf.mxu0
    %v656 = vadd.f32 %v600, %v655
    %657 = vmatmul.f32.gmra.mxu0 %v618
    %v658 = vpop.f32.mrf.mxu0
    %v659 = vadd.f32 %v600, %v658
    %660 = vmatmul.f32.gmra.mxu0 %v621
    %v661 = vpop.f32.mrf.mxu0
    %v662 = vadd.f32 %v600, %v661
    %663 = vmatmul.f32.gmra.mxu0 %v624
    %v664 = vpop.f32.mrf.mxu0
    %v665 = vadd.f32 %v600, %v664
    %666 = vdwg.mxu0
    %v667 = vld [vmem:[%s5] sm:$0xff]
    %v668 = vld [vmem:[%s5 + $0x8] sm:$0xff]
    %v669 = vld [vmem:[%s6] sm:$0x1]
    %v671 = vperm.slane %v669, 0
    %vm673 = vcmask 130048
    %v675 = vsel %vm673, %v644, 0
    %v678 = vsel %vm673, %v647, 0
    %v681 = vsel %vm673, %v650, 0
    %v684 = vsel %vm673, %v653, 0
    %v687 = vsel %vm673, %v656, 0
    %v690 = vsel %vm673, %v659, 0
    %v693 = vsel %vm673, %v662, 0
    %v696 = vsel %vm673, %v665, 0
    %698 = vmatpush.msra.mxu0 0.0
    %699 = vmatpush.msra.mxu0 0.0
    %700 = vmatpush.msra.mxu0 0.0
    %701 = vmatpush.msra.mxu0 0.0
    %702 = vmatpush.msra.mxu0 0.0
    %703 = vmatpush.msra.mxu0 0.0
    %704 = vmatpush.msra.mxu0 0.0
    %705 = vmatpush.msra.mxu0 0.0
    %706 = vmatpush.msra.mxu0 0.0
    %707 = vmatpush.msra.mxu0 0.0
    %708 = vmatpush.msra.mxu0 0.0
    %709 = vmatpush.msra.mxu0 0.0
    %710 = vmatpush.msra.mxu0 0.0
    %711 = vmatpush.msra.mxu0 0.0
    %712 = vmatpush.msra.mxu0 %v668
    %713 = vmatpush.msra.mxu0 %v667
    %714 = vmatmul.f32.gmra.mxu0 %v675
    %v715 = vpop.f32.mrf.mxu0
    %v716 = vadd.f32 %v671, %v715
    %717 = vmatmul.f32.gmra.mxu0 %v678
    %v718 = vpop.f32.mrf.mxu0
    %v719 = vadd.f32 %v671, %v718
    %720 = vmatmul.f32.gmra.mxu0 %v681
    %v721 = vpop.f32.mrf.mxu0
    %v722 = vadd.f32 %v671, %v721
    %723 = vmatmul.f32.gmra.mxu0 %v684
    %v724 = vpop.f32.mrf.mxu0
    %v725 = vadd.f32 %v671, %v724
    %726 = vmatmul.f32.gmra.mxu0 %v687
    %v727 = vpop.f32.mrf.mxu0
    %v728 = vadd.f32 %v671, %v727
    %729 = vmatmul.f32.gmra.mxu0 %v690
    %v730 = vpop.f32.mrf.mxu0
    %v731 = vadd.f32 %v671, %v730
    %732 = vmatmul.f32.gmra.mxu0 %v693
    %v733 = vpop.f32.mrf.mxu0
    %v734 = vadd.f32 %v671, %v733
    %735 = vmatmul.f32.gmra.mxu0 %v696
    %v736 = vpop.f32.mrf.mxu0
    %v737 = vadd.f32 %v671, %v736
    %738 = vdwg.mxu0
    %v739 = vmax.f32 %v716, 0.0
    %v740 = vmax.f32 %v719, 0.0
    %v741 = vmax.f32 %v722, 0.0
    %v742 = vmax.f32 %v725, 0.0
    %v743 = vmax.f32 %v728, 0.0
    %v744 = vmax.f32 %v731, 0.0
    %v745 = vmax.f32 %v734, 0.0
    %v746 = vmax.f32 %v737, 0.0
    %v747 = vld [vmem:[%s7] sm:$0xff]
    %v748 = vld [vmem:[%s7 + $0x8] sm:$0xff]
    %v749 = vld [vmem:[%s7 + $0x10] sm:$0xff]
    %v750 = vld [vmem:[%s7 + $0x18] sm:$0xff]
    %v751 = vld [vmem:[#allocation4] sm:$0x1]
    %v753 = vperm.slane %v751, 0
    %v756 = vsel %vm349, %v739, 0
    %v759 = vsel %vm349, %v740, 0
    %v762 = vsel %vm349, %v741, 0
    %v765 = vsel %vm349, %v742, 0
    %v768 = vsel %vm349, %v743, 0
    %v771 = vsel %vm349, %v744, 0
    %v774 = vsel %vm349, %v745, 0
    %v777 = vsel %vm349, %v746, 0
    %779 = vmatpush.msra.mxu0 0.0
    %780 = vmatpush.msra.mxu0 0.0
    %781 = vmatpush.msra.mxu0 0.0
    %782 = vmatpush.msra.mxu0 0.0
    %783 = vmatpush.msra.mxu0 0.0
    %784 = vmatpush.msra.mxu0 0.0
    %785 = vmatpush.msra.mxu0 0.0
    %786 = vmatpush.msra.mxu0 0.0
    %787 = vmatpush.msra.mxu0 0.0
    %788 = vmatpush.msra.mxu0 0.0
    %789 = vmatpush.msra.mxu0 0.0
    %790 = vmatpush.msra.mxu0 0.0
    %791 = vmatpush.msra.mxu0 %v750
    %792 = vmatpush.msra.mxu0 %v749
    %793 = vmatpush.msra.mxu0 %v748
    %794 = vmatpush.msra.mxu0 %v747
    %795 = vmatmul.f32.gmra.mxu0 %v756
    %v796 = vpop.f32.mrf.mxu0
    %v797 = vadd.f32 %v753, %v796
    %798 = vmatmul.f32.gmra.mxu0 %v759
    %v799 = vpop.f32.mrf.mxu0
    %v800 = vadd.f32 %v753, %v799
    %801 = vmatmul.f32.gmra.mxu0 %v762
    %v802 = vpop.f32.mrf.mxu0
    %v803 = vadd.f32 %v753, %v802
    %804 = vmatmul.f32.gmra.mxu0 %v765
    %v805 = vpop.f32.mrf.mxu0
    %v806 = vadd.f32 %v753, %v805
    %807 = vmatmul.f32.gmra.mxu0 %v768
    %v808 = vpop.f32.mrf.mxu0
    %v809 = vadd.f32 %v753, %v808
    %810 = vmatmul.f32.gmra.mxu0 %v771
    %v811 = vpop.f32.mrf.mxu0
    %v812 = vadd.f32 %v753, %v811
    %813 = vmatmul.f32.gmra.mxu0 %v774
    %v814 = vpop.f32.mrf.mxu0
    %v815 = vadd.f32 %v753, %v814
    %816 = vmatmul.f32.gmra.mxu0 %v777
    %v817 = vpop.f32.mrf.mxu0
    %v818 = vadd.f32 %v753, %v817
    %819 = vdwg.mxu0
    %820 = vst.msk [vmem:[%s9] sm:$0xff] %vm398, %v797
    %821 = vst.msk [vmem:[%s9 + $0x8] sm:$0xff] %vm398, %v800
    %822 = vst.msk [vmem:[%s9 + $0x10] sm:$0xff] %vm398, %v803
    %823 = vst.msk [vmem:[%s9 + $0x18] sm:$0xff] %vm398, %v806
    %824 = vst.msk [vmem:[%s9 + $0x20] sm:$0xff] %vm398, %v809
    %825 = vst.msk [vmem:[%s9 + $0x28] sm:$0xff] %vm398, %v812
    %826 = vst.msk [vmem:[%s9 + $0x30] sm:$0xff] %vm398, %v815
    %827 = vst.msk [vmem:[%s9 + $0x38] sm:$0xff] %vm398, %v818
  $region45: #{_forward_impl.3} parent=0 // pred_fallthru
    _
  // Predicated region
  $region46: #{_forward_impl.3} parent=0 // pred_check
    _
  $region47: #{_forward_impl.3} parent=0 // pred_check_branch
    %829 = sbr.rel (0) target = $region49
  $region48: #{_forward_impl.3} parent=0 // pred_region
    _
  $region49: #{_forward_impl.3} parent=0 // pred_fallthru
    _
  // Predicated region
  $region50: #{_forward_impl.3} parent=0 // pred_check
    _
  $region51: #{_forward_impl.3} parent=0 // pred_check_branch
    %831 = sbr.rel (0) target = $region53
  $region52: #{_forward_impl.3} parent=0 // pred_region
    _
  $region53: #{_forward_impl.3} parent=0 // pred_fallthru
    _

</llo_original>
